<compile_context>
chip_gen: v7x
topology: tpu7x:2x2x1
jax: 0.10.0
libtpu: 0.0.40
codegen_flags: <defaults>
</compile_context>

<pallas_src>
import jax
import jax.numpy as jnp
from jax.experimental import pallas as pl
from jax.experimental.pallas import tpu as pltpu

IN_CH = 3
SHUFFLE_FEATURES = 1024     # shufflenet_v2_x1_0 fc.in_features
VIT_FEATURES = 192          # efficientvit_m2 num_features
FEAT = 1024                 # concatenated pre-ReLU adapter-L1 width (512 + 512)
NUM_CLASSES = 7
OUT_PAD = 128               # lane-dense classifier output, sliced to 7 in wrapper
LN_EPS = 1e-5


def _round_up(x, m):
    return (x + m - 1) // m * m


def _choose_batch_tile(B):
    b8 = _round_up(B, 8)
    if b8 <= 128:
        return b8                   # single grid step for small batches
    # Keep >=2 grid steps so the "parallel" batch axis shards across v7x's two
    # TensorCores; 256-row tiles fill the v6e/v7x MXU M dim once B is large.
    if b8 >= 512:
        return 256
    return 128


# ------------------------------- kernel ---------------------------------------

def hybrid_fer_kernel(
    x_ref,                              # (TB, 1024) f32: pre-ReLU [shuffle | vit] adapter L1
    wc_ref, bc_ref,                     # folded adapterL2+attn(V,out)+fusionL1: (1024,256) bf16
    ln1g_ref, ln1b_ref,                 # LayerNorm(256)
    fw2_ref, fb2_ref,                   # fusion Linear(256,128)
    ln2g_ref, ln2b_ref,                 # LayerNorm(128)
    cw1_ref, cb1_ref,                   # classifier Linear(128,64) padded to 128 lanes
    cw2_ref, cb2_ref,                   # classifier Linear(64,7) padded to (128,128)
    out_ref,                            # (TB, OUT_PAD) f32
):
    def linear(h_bf16, w_ref, b_ref):
        # bf16 operands into the MXU, f32 accumulate, f32 bias add.
        return jnp.dot(h_bf16, w_ref[...],
                       preferred_element_type=jnp.float32) + b_ref[...]

    def layernorm(h, g_ref, b_ref):
        mu = jnp.mean(h, axis=-1, keepdims=True)
        var = jnp.mean(jnp.square(h - mu), axis=-1, keepdims=True)
        return (h - mu) * jax.lax.rsqrt(var + LN_EPS) * g_ref[...] + b_ref[...]

    # adapter-L1 ReLU (Dropout = eval identity); relu(concat) == concat(relu)
    h = jax.nn.relu(x_ref[...]).astype(jnp.bfloat16)             # (TB, 1024)

    # adapter L2 + cross-attention (seq_len==1 collapse) + fusion Linear(512,256),
    # all folded offline into one matmul.
    z = linear(h, wc_ref, bc_ref)                                # (TB, 256) f32
    h = jax.nn.relu(layernorm(z, ln1g_ref, ln1b_ref)).astype(jnp.bfloat16)

    # fusion Linear(256,128) + LayerNorm + ReLU
    z = linear(h, fw2_ref, fb2_ref)                              # (TB, 128) f32
    h = jax.nn.relu(layernorm(z, ln2g_ref, ln2b_ref)).astype(jnp.bfloat16)

    # classifier: Linear(128,64)+ReLU (lane-padded to 128), Linear(64,7) (padded)
    h = jax.nn.relu(linear(h, cw1_ref, cb1_ref)).astype(jnp.bfloat16)
    out_ref[...] = linear(h, cw2_ref, cb2_ref)                   # cols >= 7 are 0


# ------------------------------- wrapper --------------------------------------

def hybrid_fer_forward(x_nchw, params):
    B, C, H, W = x_nchw.shape
    assert C == IN_CH

    w_pre, b_pre = params["w_pre"], params["b_pre"]
    kernel_ws = params["kernel"]

    # Backbone stand-in (global average pool) + folded adapter-L1 projection in
    # XLA: the (B,3)@(3,1024) matmul is the worst possible MXU shape, and the
    # resulting (B,1024) kernel-input DMA is negligible at HBM bandwidth.
    pooled = jnp.mean(x_nchw.reshape(B, C, H * W), axis=-1)      # (B, 3) f32
    x_pre = pooled @ w_pre + b_pre                               # (B, 1024) f32, pre-ReLU

    TB = _choose_batch_tile(B)
    B_pad = _round_up(B, TB)
    if B_pad != B:
        x_pre = jnp.pad(x_pre, ((0, B_pad - B), (0, 0)))
    grid = (B_pad // TB,)

    def _wspec(p):
        # Whole weight resident in VMEM; constant block index => DMA'd once.
        return pl.BlockSpec(p.shape, lambda i: (0, 0))

    in_specs = [pl.BlockSpec((TB, FEAT), lambda i: (i, 0))]
    in_specs += [_wspec(p) for p in kernel_ws]
    out_spec = pl.BlockSpec((TB, OUT_PAD), lambda i: (i, 0))

    out = pl.pallas_call(
        hybrid_fer_kernel,
        out_shape=jax.ShapeDtypeStruct((B_pad, OUT_PAD), jnp.float32),
        grid=grid,
        in_specs=in_specs,
        out_specs=out_spec,
        compiler_params=pltpu.CompilerParams(
            dimension_semantics=("parallel",),      # megacore sharding on v7x
            vmem_limit_bytes=32 * 1024 * 1024,
        ),
    )(x_pre, *kernel_ws)

    return out[:B, :NUM_CLASSES]


# ------------------------------ parameters ------------------------------------

def _w(key, fan_in, fan_out):
    return jax.random.normal(key, (fan_in, fan_out), jnp.float32) * 0.02


def _b(key, fan_out):
    return jax.random.normal(key, (1, fan_out), jnp.float32) * 0.01


def init_raw_params(key):
    """Per-layer weights mirroring the PyTorch module ((in, out) convention)."""
    ks = jax.random.split(key, 12)
    return {
        # TODO(synk): pretrained shufflenet/efficientvit replaced by pool+linear stand-in.
        "sb_w": _w(ks[0], IN_CH, SHUFFLE_FEATURES), "sb_b": _b(ks[0], SHUFFLE_FEATURES),
        "vb_w": _w(ks[1], IN_CH, VIT_FEATURES),     "vb_b": _b(ks[1], VIT_FEATURES),
        # shuffle_adapter / vit_adapter
        "sa_w1": _w(ks[2], SHUFFLE_FEATURES, 512),  "sa_b1": _b(ks[2], 512),
        "sa_w2": _w(ks[3], 512, 256),               "sa_b2": _b(ks[3], 256),
        "va_w1": _w(ks[4], VIT_FEATURES, 512),      "va_b1": _b(ks[4], 512),
        "va_w2": _w(ks[5], 512, 256),               "va_b2": _b(ks[5], 256),
        # cross_attention: only the V in_proj slice + out_proj matter (seq_len==1)
        "wv": _w(ks[6], 256, 256),                  "bv": _b(ks[6], 256),
        "wo": _w(ks[7], 256, 256),                  "bo": _b(ks[7], 256),
        # fusion
        "fw1": _w(ks[8], 512, 256),                 "fb1": _b(ks[8], 256),
        "ln1_g": jnp.ones((1, 256), jnp.float32),   "ln1_b": jnp.zeros((1, 256), jnp.float32),
        "fw2": _w(ks[9], 256, 128),                 "fb2": _b(ks[9], 128),
        "ln2_g": jnp.ones((1, 128), jnp.float32),   "ln2_b": jnp.zeros((1, 128), jnp.float32),
        # classifier
        "cw1": _w(ks[10], 128, 64),                 "cb1": _b(ks[10], 64),
        "cw2": _w(ks[11], 64, NUM_CLASSES),         "cb2": _b(ks[11], NUM_CLASSES),
    }


def fold_params(raw):
    """Exact eval-mode algebraic folds, computed in f32, cast to bf16 once."""
    f32 = jnp.float32

    # -- backbone stand-in + adapter first Linear -> wrapper-side projection
    w_pre = jnp.concatenate(
        [raw["sb_w"] @ raw["sa_w1"], raw["vb_w"] @ raw["va_w1"]], axis=1)       # (3, 1024)
    b_pre = jnp.concatenate(
        [raw["sb_b"] @ raw["sa_w1"] + raw["sa_b1"],
         raw["vb_b"] @ raw["va_w1"] + raw["va_b1"]], axis=1)                    # (1, 1024)

    # -- adapter L2 + attention collapse + fusion first Linear (kernel weight)
    # seq_len==1: softmax==1, Q/K cancel => attended = kv @ (wv@wo) + (bv@wo+bo)
    w_vo = raw["wv"] @ raw["wo"]                                                # (256, 256)
    b_vo = raw["bv"] @ raw["wo"] + raw["bo"]                                    # (1, 256)
    fw1_a = raw["fw1"][:256]     # multiplies shuffle_attended (= f(vit path))
    fw1_b = raw["fw1"][256:]     # multiplies vit_attended     (= f(shuffle path))
    w_s_chain = raw["sa_w2"] @ w_vo @ fw1_b                                     # (512, 256)
    w_v_chain = raw["va_w2"] @ w_vo @ fw1_a                                     # (512, 256)
    wc = jnp.concatenate([w_s_chain, w_v_chain], axis=0)                        # (1024, 256)
    bc = (raw["sa_b2"] @ w_vo @ fw1_b + raw["va_b2"] @ w_vo @ fw1_a
          + b_vo @ (fw1_a + fw1_b) + raw["fb1"])                                # (1, 256)

    # -- classifier: lane-dense padding (64 -> 128 hidden, 7 -> 128 logits)
    cw1 = jnp.zeros((128, 128), f32).at[:, :64].set(raw["cw1"])
    cb1 = jnp.zeros((1, 128), f32).at[:, :64].set(raw["cb1"])
    cw2 = jnp.zeros((128, OUT_PAD), f32).at[:64, :NUM_CLASSES].set(raw["cw2"])
    cb2 = jnp.zeros((1, OUT_PAD), f32).at[:, :NUM_CLASSES].set(raw["cb2"])

    kernel_params = [
        wc.astype(jnp.bfloat16), bc,
        raw["ln1_g"], raw["ln1_b"],
        raw["fw2"].astype(jnp.bfloat16), raw["fb2"],
        raw["ln2_g"], raw["ln2_b"],
        cw1.astype(jnp.bfloat16), cb1,
        cw2.astype(jnp.bfloat16), cb2,
    ]
    return {"w_pre": w_pre, "b_pre": b_pre, "kernel": kernel_params}


if __name__ == "__main__":
    key = jax.random.PRNGKey(0)
    kx, kp = jax.random.split(key)
    x = jax.random.normal(kx, (2, IN_CH, 16, 16), jnp.float32)   # NCHW, like PyTorch
    params = fold_params(init_raw_params(kp))
    out = hybrid_fer_forward(x, params)
    out = jax.block_until_ready(out)
    assert out.shape == (2, NUM_CLASSES)
    assert bool(jnp.all(jnp.isfinite(out)))
    print("KERNEL_OK")
</pallas_src>

<mosaic_0001>
module attributes {stable_mosaic.version = 11 : i64} {
  func.func @hybrid_fer_kernel(%arg0: i32, %arg1: memref<8x1024xf32, #tpu.memory_space<vmem>>, %arg2: memref<1024x256xbf16, #tpu.memory_space<vmem>>, %arg3: memref<1x256xf32, #tpu.memory_space<vmem>>, %arg4: memref<1x256xf32, #tpu.memory_space<vmem>>, %arg5: memref<1x256xf32, #tpu.memory_space<vmem>>, %arg6: memref<256x128xbf16, #tpu.memory_space<vmem>>, %arg7: memref<1x128xf32, #tpu.memory_space<vmem>>, %arg8: memref<1x128xf32, #tpu.memory_space<vmem>>, %arg9: memref<1x128xf32, #tpu.memory_space<vmem>>, %arg10: memref<128x128xbf16, #tpu.memory_space<vmem>>, %arg11: memref<1x128xf32, #tpu.memory_space<vmem>>, %arg12: memref<128x128xbf16, #tpu.memory_space<vmem>>, %arg13: memref<1x128xf32, #tpu.memory_space<vmem>>, %arg14: memref<8x128xf32, #tpu.memory_space<vmem>>) attributes {dimension_semantics = [#tpu.dimension_semantics<parallel>], iteration_bounds = array<i64: 1>, scalar_prefetch = 0 : i64, scratch_operands = 0 : i64, tpu.core_type = #tpu.core_type<tc>, window_params = [{transform_indices = @transform_0, window_bounds = array<i64: 8, 1024>}, {pipeline_mode = #tpu.pipeline_mode<synchronous>, transform_indices = @transform_1, window_bounds = array<i64: 1024, 256>}, {pipeline_mode = #tpu.pipeline_mode<synchronous>, transform_indices = @transform_2, window_bounds = array<i64: 1, 256>}, {pipeline_mode = #tpu.pipeline_mode<synchronous>, transform_indices = @transform_3, window_bounds = array<i64: 1, 256>}, {pipeline_mode = #tpu.pipeline_mode<synchronous>, transform_indices = @transform_4, window_bounds = array<i64: 1, 256>}, {pipeline_mode = #tpu.pipeline_mode<synchronous>, transform_indices = @transform_5, window_bounds = array<i64: 256, 128>}, {pipeline_mode = #tpu.pipeline_mode<synchronous>, transform_indices = @transform_6, window_bounds = array<i64: 1, 128>}, {pipeline_mode = #tpu.pipeline_mode<synchronous>, transform_indices = @transform_7, window_bounds = array<i64: 1, 128>}, {pipeline_mode = #tpu.pipeline_mode<synchronous>, transform_indices = @transform_8, window_bounds = array<i64: 1, 128>}, {pipeline_mode = #tpu.pipeline_mode<synchronous>, transform_indices = @transform_9, window_bounds = array<i64: 128, 128>}, {pipeline_mode = #tpu.pipeline_mode<synchronous>, transform_indices = @transform_10, window_bounds = array<i64: 1, 128>}, {pipeline_mode = #tpu.pipeline_mode<synchronous>, transform_indices = @transform_11, window_bounds = array<i64: 128, 128>}, {pipeline_mode = #tpu.pipeline_mode<synchronous>, transform_indices = @transform_12, window_bounds = array<i64: 1, 128>}, {transform_indices = @transform_13, window_bounds = array<i64: 8, 128>}]} {
    %c0 = arith.constant 0 : index
    %c0_0 = arith.constant 0 : index
    %0 = vector.load %arg1[%c0, %c0_0] : memref<8x1024xf32, #tpu.memory_space<vmem>>, vector<8x1024xf32>
    %cst = arith.constant 0.000000e+00 : f32
    %1 = vector.broadcast %cst : f32 to vector<8x1024xf32>
    %2 = arith.maximumf %0, %1 : vector<8x1024xf32>
    %3 = arith.truncf %2 : vector<8x1024xf32> to vector<8x1024xbf16>
    %c0_1 = arith.constant 0 : index
    %c0_2 = arith.constant 0 : index
    %4 = vector.load %arg2[%c0_1, %c0_2] : memref<1024x256xbf16, #tpu.memory_space<vmem>>, vector<1024x256xbf16>
    %cst_3 = arith.constant dense<0.000000e+00> : vector<8x256xf32>
    %5 = tpu.matmul %3, %4, %cst_3 {dimension_numbers = #tpu.dot_dimension_numbers<[1], [0], [0], [1], [0, 0, 1, 1], [], []>} : vector<8x1024xbf16>, vector<1024x256xbf16>, vector<8x256xf32> -> vector<8x256xf32>
    %c0_4 = arith.constant 0 : index
    %c0_5 = arith.constant 0 : index
    %6 = vector.load %arg3[%c0_4, %c0_5] : memref<1x256xf32, #tpu.memory_space<vmem>>, vector<1x256xf32>
    %7 = vector.broadcast %6 : vector<1x256xf32> to vector<8x256xf32>
    %8 = arith.addf %5, %7 : vector<8x256xf32>
    %cst_6 = arith.constant dense<0.000000e+00> : vector<8xf32>
    %9 = vector.multi_reduction <add>, %8, %cst_6 [1] : vector<8x256xf32> to vector<8xf32>
    %10 = vector.shape_cast %9 : vector<8xf32> to vector<8x1xf32>
    %cst_7 = arith.constant 2.560000e+02 : f32
    %11 = vector.broadcast %cst_7 : f32 to vector<8x1xf32>
    %12 = arith.divf %10, %11 : vector<8x1xf32>
    %13 = vector.broadcast %12 : vector<8x1xf32> to vector<8x256xf32>
    %14 = arith.subf %8, %13 : vector<8x256xf32>
    %15 = arith.mulf %14, %14 : vector<8x256xf32>
    %cst_8 = arith.constant dense<0.000000e+00> : vector<8xf32>
    %16 = vector.multi_reduction <add>, %15, %cst_8 [1] : vector<8x256xf32> to vector<8xf32>
    %17 = vector.shape_cast %16 : vector<8xf32> to vector<8x1xf32>
    %cst_9 = arith.constant 2.560000e+02 : f32
    %18 = vector.broadcast %cst_9 : f32 to vector<8x1xf32>
    %19 = arith.divf %17, %18 : vector<8x1xf32>
    %20 = vector.broadcast %12 : vector<8x1xf32> to vector<8x256xf32>
    %21 = arith.subf %8, %20 : vector<8x256xf32>
    %cst_10 = arith.constant 9.99999974E-6 : f32
    %22 = vector.broadcast %cst_10 : f32 to vector<8x1xf32>
    %23 = arith.addf %19, %22 : vector<8x1xf32>
    %24 = math.rsqrt %23 : vector<8x1xf32>
    %25 = vector.broadcast %24 : vector<8x1xf32> to vector<8x256xf32>
    %26 = arith.mulf %21, %25 : vector<8x256xf32>
    %c0_11 = arith.constant 0 : index
    %c0_12 = arith.constant 0 : index
    %27 = vector.load %arg4[%c0_11, %c0_12] : memref<1x256xf32, #tpu.memory_space<vmem>>, vector<1x256xf32>
    %28 = vector.broadcast %27 : vector<1x256xf32> to vector<8x256xf32>
    %29 = arith.mulf %26, %28 : vector<8x256xf32>
    %c0_13 = arith.constant 0 : index
    %c0_14 = arith.constant 0 : index
    %30 = vector.load %arg5[%c0_13, %c0_14] : memref<1x256xf32, #tpu.memory_space<vmem>>, vector<1x256xf32>
    %31 = vector.broadcast %30 : vector<1x256xf32> to vector<8x256xf32>
    %32 = arith.addf %29, %31 : vector<8x256xf32>
    %cst_15 = arith.constant 0.000000e+00 : f32
    %33 = vector.broadcast %cst_15 : f32 to vector<8x256xf32>
    %34 = arith.maximumf %32, %33 : vector<8x256xf32>
    %35 = arith.truncf %34 : vector<8x256xf32> to vector<8x256xbf16>
    %c0_16 = arith.constant 0 : index
    %c0_17 = arith.constant 0 : index
    %36 = vector.load %arg6[%c0_16, %c0_17] : memref<256x128xbf16, #tpu.memory_space<vmem>>, vector<256x128xbf16>
    %cst_18 = arith.constant dense<0.000000e+00> : vector<8x128xf32>
    %37 = tpu.matmul %35, %36, %cst_18 {dimension_numbers = #tpu.dot_dimension_numbers<[1], [0], [0], [1], [0, 0, 1, 1], [], []>} : vector<8x256xbf16>, vector<256x128xbf16>, vector<8x128xf32> -> vector<8x128xf32>
    %c0_19 = arith.constant 0 : index
    %c0_20 = arith.constant 0 : index
    %38 = vector.load %arg7[%c0_19, %c0_20] : memref<1x128xf32, #tpu.memory_space<vmem>>, vector<1x128xf32>
    %39 = vector.broadcast %38 : vector<1x128xf32> to vector<8x128xf32>
    %40 = arith.addf %37, %39 : vector<8x128xf32>
    %cst_21 = arith.constant dense<0.000000e+00> : vector<8xf32>
    %41 = vector.multi_reduction <add>, %40, %cst_21 [1] : vector<8x128xf32> to vector<8xf32>
    %42 = vector.shape_cast %41 : vector<8xf32> to vector<8x1xf32>
    %cst_22 = arith.constant 1.280000e+02 : f32
    %43 = vector.broadcast %cst_22 : f32 to vector<8x1xf32>
    %44 = arith.divf %42, %43 : vector<8x1xf32>
    %45 = vector.broadcast %44 : vector<8x1xf32> to vector<8x128xf32>
    %46 = arith.subf %40, %45 : vector<8x128xf32>
    %47 = arith.mulf %46, %46 : vector<8x128xf32>
    %cst_23 = arith.constant dense<0.000000e+00> : vector<8xf32>
    %48 = vector.multi_reduction <add>, %47, %cst_23 [1] : vector<8x128xf32> to vector<8xf32>
    %49 = vector.shape_cast %48 : vector<8xf32> to vector<8x1xf32>
    %cst_24 = arith.constant 1.280000e+02 : f32
    %50 = vector.broadcast %cst_24 : f32 to vector<8x1xf32>
    %51 = arith.divf %49, %50 : vector<8x1xf32>
    %52 = vector.broadcast %44 : vector<8x1xf32> to vector<8x128xf32>
    %53 = arith.subf %40, %52 : vector<8x128xf32>
    %cst_25 = arith.constant 9.99999974E-6 : f32
    %54 = vector.broadcast %cst_25 : f32 to vector<8x1xf32>
    %55 = arith.addf %51, %54 : vector<8x1xf32>
    %56 = math.rsqrt %55 : vector<8x1xf32>
    %57 = vector.broadcast %56 : vector<8x1xf32> to vector<8x128xf32>
    %58 = arith.mulf %53, %57 : vector<8x128xf32>
    %c0_26 = arith.constant 0 : index
    %c0_27 = arith.constant 0 : index
    %59 = vector.load %arg8[%c0_26, %c0_27] : memref<1x128xf32, #tpu.memory_space<vmem>>, vector<1x128xf32>
    %60 = vector.broadcast %59 : vector<1x128xf32> to vector<8x128xf32>
    %61 = arith.mulf %58, %60 : vector<8x128xf32>
    %c0_28 = arith.constant 0 : index
    %c0_29 = arith.constant 0 : index
    %62 = vector.load %arg9[%c0_28, %c0_29] : memref<1x128xf32, #tpu.memory_space<vmem>>, vector<1x128xf32>
    %63 = vector.broadcast %62 : vector<1x128xf32> to vector<8x128xf32>
    %64 = arith.addf %61, %63 : vector<8x128xf32>
    %cst_30 = arith.constant 0.000000e+00 : f32
    %65 = vector.broadcast %cst_30 : f32 to vector<8x128xf32>
    %66 = arith.maximumf %64, %65 : vector<8x128xf32>
    %67 = arith.truncf %66 : vector<8x128xf32> to vector<8x128xbf16>
    %c0_31 = arith.constant 0 : index
    %c0_32 = arith.constant 0 : index
    %68 = vector.load %arg10[%c0_31, %c0_32] : memref<128x128xbf16, #tpu.memory_space<vmem>>, vector<128x128xbf16>
    %cst_33 = arith.constant dense<0.000000e+00> : vector<8x128xf32>
    %69 = tpu.matmul %67, %68, %cst_33 {dimension_numbers = #tpu.dot_dimension_numbers<[1], [0], [0], [1], [0, 0, 1, 1], [], []>} : vector<8x128xbf16>, vector<128x128xbf16>, vector<8x128xf32> -> vector<8x128xf32>
    %c0_34 = arith.constant 0 : index
    %c0_35 = arith.constant 0 : index
    %70 = vector.load %arg11[%c0_34, %c0_35] : memref<1x128xf32, #tpu.memory_space<vmem>>, vector<1x128xf32>
    %71 = vector.broadcast %70 : vector<1x128xf32> to vector<8x128xf32>
    %72 = arith.addf %69, %71 : vector<8x128xf32>
    %cst_36 = arith.constant 0.000000e+00 : f32
    %73 = vector.broadcast %cst_36 : f32 to vector<8x128xf32>
    %74 = arith.maximumf %72, %73 : vector<8x128xf32>
    %75 = arith.truncf %74 : vector<8x128xf32> to vector<8x128xbf16>
    %c0_37 = arith.constant 0 : index
    %c0_38 = arith.constant 0 : index
    %76 = vector.load %arg12[%c0_37, %c0_38] : memref<128x128xbf16, #tpu.memory_space<vmem>>, vector<128x128xbf16>
    %cst_39 = arith.constant dense<0.000000e+00> : vector<8x128xf32>
    %77 = tpu.matmul %75, %76, %cst_39 {dimension_numbers = #tpu.dot_dimension_numbers<[1], [0], [0], [1], [0, 0, 1, 1], [], []>} : vector<8x128xbf16>, vector<128x128xbf16>, vector<8x128xf32> -> vector<8x128xf32>
    %c0_40 = arith.constant 0 : index
    %c0_41 = arith.constant 0 : index
    %78 = vector.load %arg13[%c0_40, %c0_41] : memref<1x128xf32, #tpu.memory_space<vmem>>, vector<1x128xf32>
    %79 = vector.broadcast %78 : vector<1x128xf32> to vector<8x128xf32>
    %80 = arith.addf %77, %79 : vector<8x128xf32>
    %c0_42 = arith.constant 0 : index
    %c0_43 = arith.constant 0 : index
    %81 = vector.load %arg14[%c0_42, %c0_43] : memref<8x128xf32, #tpu.memory_space<vmem>>, vector<8x128xf32>
    tpu.vector_store %arg14[%c0_42, %c0_43], %80 {strides = array<i32>} : memref<8x128xf32, #tpu.memory_space<vmem>>, vector<8x128xf32>,
    return
  }
  func.func @transform_0(%arg0: i32) -> (i32, i32) {
    %c0_i32 = arith.constant 0 : i32
    %c0_i32_0 = arith.constant 0 : i32
    return %arg0, %c0_i32 : i32, i32
  }
  func.func @transform_1(%arg0: i32) -> (i32, i32) {
    %c0_i32 = arith.constant 0 : i32
    %c0_i32_0 = arith.constant 0 : i32
    %c0_i32_1 = arith.constant 0 : i32
    return %c0_i32, %c0_i32_0 : i32, i32
  }
  func.func @transform_2(%arg0: i32) -> (i32, i32) {
    %c0_i32 = arith.constant 0 : i32
    %c0_i32_0 = arith.constant 0 : i32
    %c0_i32_1 = arith.constant 0 : i32
    return %c0_i32, %c0_i32_0 : i32, i32
  }
  func.func @transform_3(%arg0: i32) -> (i32, i32) {
    %c0_i32 = arith.constant 0 : i32
    %c0_i32_0 = arith.constant 0 : i32
    %c0_i32_1 = arith.constant 0 : i32
    return %c0_i32, %c0_i32_0 : i32, i32
  }
  func.func @transform_4(%arg0: i32) -> (i32, i32) {
    %c0_i32 = arith.constant 0 : i32
    %c0_i32_0 = arith.constant 0 : i32
    %c0_i32_1 = arith.constant 0 : i32
    return %c0_i32, %c0_i32_0 : i32, i32
  }
  func.func @transform_5(%arg0: i32) -> (i32, i32) {
    %c0_i32 = arith.constant 0 : i32
    %c0_i32_0 = arith.constant 0 : i32
    %c0_i32_1 = arith.constant 0 : i32
    return %c0_i32, %c0_i32_0 : i32, i32
  }
  func.func @transform_6(%arg0: i32) -> (i32, i32) {
    %c0_i32 = arith.constant 0 : i32
    %c0_i32_0 = arith.constant 0 : i32
    %c0_i32_1 = arith.constant 0 : i32
    return %c0_i32, %c0_i32_0 : i32, i32
  }
  func.func @transform_7(%arg0: i32) -> (i32, i32) {
    %c0_i32 = arith.constant 0 : i32
    %c0_i32_0 = arith.constant 0 : i32
    %c0_i32_1 = arith.constant 0 : i32
    return %c0_i32, %c0_i32_0 : i32, i32
  }
  func.func @transform_8(%arg0: i32) -> (i32, i32) {
    %c0_i32 = arith.constant 0 : i32
    %c0_i32_0 = arith.constant 0 : i32
    %c0_i32_1 = arith.constant 0 : i32
    return %c0_i32, %c0_i32_0 : i32, i32
  }
  func.func @transform_9(%arg0: i32) -> (i32, i32) {
    %c0_i32 = arith.constant 0 : i32
    %c0_i32_0 = arith.constant 0 : i32
    %c0_i32_1 = arith.constant 0 : i32
    return %c0_i32, %c0_i32_0 : i32, i32
  }
  func.func @transform_10(%arg0: i32) -> (i32, i32) {
    %c0_i32 = arith.constant 0 : i32
    %c0_i32_0 = arith.constant 0 : i32
    %c0_i32_1 = arith.constant 0 : i32
    return %c0_i32, %c0_i32_0 : i32, i32
  }
  func.func @transform_11(%arg0: i32) -> (i32, i32) {
    %c0_i32 = arith.constant 0 : i32
    %c0_i32_0 = arith.constant 0 : i32
    %c0_i32_1 = arith.constant 0 : i32
    return %c0_i32, %c0_i32_0 : i32, i32
  }
  func.func @transform_12(%arg0: i32) -> (i32, i32) {
    %c0_i32 = arith.constant 0 : i32
    %c0_i32_0 = arith.constant 0 : i32
    %c0_i32_1 = arith.constant 0 : i32
    return %c0_i32, %c0_i32_0 : i32, i32
  }
  func.func @transform_13(%arg0: i32) -> (i32, i32) {
    %c0_i32 = arith.constant 0 : i32
    %c0_i32_0 = arith.constant 0 : i32
    return %arg0, %c0_i32 : i32, i32
  }
}

</mosaic_0001>

<llo_original>
// kernel: tpu_custom_call.1
$region0: #{tpu_custom_call.1}
  #allocation0 [shape = 'u32[]', space=smem, size = 0x4, offset = 0x4, fixed_abs, tag = 'smem constant byte address 0x4 - core index']
  #allocation1 [shape = 'u32[144,128]{1,0:T(1,128)}', space=vmem, size = 0x12000, scoped, tag = 'internal scratch']
  %s0 = inlined_call_operand.hbm [shape: f32[8,1024], index: 0, kind: input, shape index: {}]
  %s1 = inlined_call_operand.hbm [shape: bf16[1024,256], index: 1, kind: input, shape index: {}]
  %s2 = inlined_call_operand.vmem [shape: f32[1,256], index: 2, kind: input, shape index: {}]
  %s3 = inlined_call_operand.vmem [shape: f32[1,256], index: 3, kind: input, shape index: {}]
  %s4 = inlined_call_operand.vmem [shape: f32[1,256], index: 4, kind: input, shape index: {}]
  %s5 = inlined_call_operand.hbm [shape: bf16[256,128], index: 5, kind: input, shape index: {}]
  %s6 = inlined_call_operand.vmem [shape: f32[1,128], index: 6, kind: input, shape index: {}]
  %s7 = inlined_call_operand.vmem [shape: f32[1,128], index: 7, kind: input, shape index: {}]
  %s8 = inlined_call_operand.vmem [shape: f32[1,128], index: 8, kind: input, shape index: {}]
  %s9 = inlined_call_operand.hbm [shape: bf16[128,128], index: 9, kind: input, shape index: {}]
  %s10 = inlined_call_operand.vmem [shape: f32[1,128], index: 10, kind: input, shape index: {}]
  %s11 = inlined_call_operand.hbm [shape: bf16[128,128], index: 11, kind: input, shape index: {}]
  %s12 = inlined_call_operand.vmem [shape: f32[1,128], index: 12, kind: input, shape index: {}]
  %s13 = inlined_call_operand.hbm [shape: f32[8,128], index: 13, kind: output, shape index: {}]
  %s14 = sld [smem:[#allocation0]]
  $region82: #{tpu_custom_call.1} parent=0
    _
  %s16 = ssub.s32 1, %s14
  %s17 = scalar_select 0, %s16, %s14
  $region1: #{tpu_custom_call.1} parent=0
    #allocation2 [shape = 'u8[32768]{0}', space=vmem, size = 0x8000, scoped, tag = 'input window, operand 0, single buffered']
    #allocation3 [shape = 's32[1]{0}', space=sflag, size = 0x4, scoped, tag = 'scoped memory for tpu_custom_call.1']
    #allocation4 [shape = 's32[1]{0}', space=sflag, size = 0x4, scoped, tag = 'scoped memory for tpu_custom_call.1']
    #allocation5 [shape = 'u8[524288]{0}', space=vmem, size = 0x80000, scoped, tag = 'input window, operand 1, single buffered']
    #allocation6 [shape = 's32[1]{0}', space=sflag, size = 0x4, scoped, tag = 'scoped memory for tpu_custom_call.1']
    #allocation7 [shape = 'u8[65536]{0}', space=vmem, size = 0x10000, scoped, tag = 'input window, operand 5, single buffered']
    #allocation8 [shape = 'u8[32768]{0}', space=vmem, size = 0x8000, scoped, tag = 'input window, operand 9, single buffered']
    #allocation9 [shape = 's32[1]{0}', space=sflag, size = 0x4, scoped, tag = 'scoped memory for tpu_custom_call.1']
    #allocation10 [shape = 'u8[32768]{0}', space=vmem, size = 0x8000, scoped, tag = 'input window, operand 11, single buffered']
    #allocation11 [shape = 'u8[4096]{0}', space=vmem, size = 0x1000, scoped, tag = 'output window, operand 0, single buffered']
    %18 = vsyncpa [#allocation3], 0
    %19 = vsyncpa [#allocation6], 0
    %20 = vsyncpa [#allocation9], 0
    %21 = vsyncpa [#allocation4], 0
    // Predicated region
    $region2: #{tpu_custom_call.1} parent=1 // pred_check
      _
    $region3: #{tpu_custom_call.1} parent=1 // pred_check_branch
      %23 = sbr.rel (0) target = $region5
    $region4: #{tpu_custom_call.1} parent=1 // pred_region
      %s25 = ssub.s32 1024, 1024
      %26 = vsyncadd [#allocation3], %s25
      %s28 = sshll.u32 [#allocation2], 4
      %s29 = int_to_ptr.vmem [resolvable:$true] %s28
      %31 = dma.hbm_to_vmem [thread:$0]  %s0, 1024, %s29, [#allocation3]
    $region5: #{tpu_custom_call.1} parent=1 // pred_fallthru
      _
    // Predicated region
    $region6: #{tpu_custom_call.1} parent=1 // pred_check
      _
    $region7: #{tpu_custom_call.1} parent=1 // pred_check_branch
      %33 = sbr.rel (0) target = $region9
    $region8: #{tpu_custom_call.1} parent=1 // pred_region
      %s35 = ssub.s32 16384, 16384
      %36 = vsyncadd [#allocation6], %s35
      %s37 = sshll.u32 [#allocation5], 4
      %s38 = int_to_ptr.vmem [resolvable:$true] %s37
      %43 = dma.hbm_to_vmem [thread:$0]  %s1, 16384, %s38, [#allocation6], 128, 128, 8
    $region9: #{tpu_custom_call.1} parent=1 // pred_fallthru
      _
    // Predicated region
    $region10: #{tpu_custom_call.1} parent=1 // pred_check
      _
    $region11: #{tpu_custom_call.1} parent=1 // pred_check_branch
      %45 = sbr.rel (0) target = $region13
    $region12: #{tpu_custom_call.1} parent=1 // pred_region
      _
    $region13: #{tpu_custom_call.1} parent=1 // pred_fallthru
      _
    // Predicated region
    $region14: #{tpu_custom_call.1} parent=1 // pred_check
      _
    $region15: #{tpu_custom_call.1} parent=1 // pred_check_branch
      %47 = sbr.rel (0) target = $region17
    $region16: #{tpu_custom_call.1} parent=1 // pred_region
      _
    $region17: #{tpu_custom_call.1} parent=1 // pred_fallthru
      _
    // Predicated region
    $region18: #{tpu_custom_call.1} parent=1 // pred_check
      _
    $region19: #{tpu_custom_call.1} parent=1 // pred_check_branch
      %49 = sbr.rel (0) target = $region21
    $region20: #{tpu_custom_call.1} parent=1 // pred_region
      _
    $region21: #{tpu_custom_call.1} parent=1 // pred_fallthru
      _
    // Predicated region
    $region22: #{tpu_custom_call.1} parent=1 // pred_check
      _
    $region23: #{tpu_custom_call.1} parent=1 // pred_check_branch
      %51 = sbr.rel (0) target = $region25
    $region24: #{tpu_custom_call.1} parent=1 // pred_region
      %s53 = ssub.s32 2048, 2048
      %54 = vsyncadd [#allocation6], %s53
      %s55 = sshll.u32 [#allocation7], 4
      %s56 = int_to_ptr.vmem [resolvable:$true] %s55
      %61 = dma.hbm_to_vmem [thread:$0]  %s5, 2048, %s56, [#allocation6], 64, 64, 4
    $region25: #{tpu_custom_call.1} parent=1 // pred_fallthru
      _
    // Predicated region
    $region26: #{tpu_custom_call.1} parent=1 // pred_check
      _
    $region27: #{tpu_custom_call.1} parent=1 // pred_check_branch
      %63 = sbr.rel (0) target = $region29
    $region28: #{tpu_custom_call.1} parent=1 // pred_region
      _
    $region29: #{tpu_custom_call.1} parent=1 // pred_fallthru
      _
    // Predicated region
    $region30: #{tpu_custom_call.1} parent=1 // pred_check
      _
    $region31: #{tpu_custom_call.1} parent=1 // pred_check_branch
      %65 = sbr.rel (0) target = $region33
    $region32: #{tpu_custom_call.1} parent=1 // pred_region
      _
    $region33: #{tpu_custom_call.1} parent=1 // pred_fallthru
      _
    // Predicated region
    $region34: #{tpu_custom_call.1} parent=1 // pred_check
      _
    $region35: #{tpu_custom_call.1} parent=1 // pred_check_branch
      %67 = sbr.rel (0) target = $region37
    $region36: #{tpu_custom_call.1} parent=1 // pred_region
      _
    $region37: #{tpu_custom_call.1} parent=1 // pred_fallthru
      _
    // Predicated region
    $region38: #{tpu_custom_call.1} parent=1 // pred_check
      _
    $region39: #{tpu_custom_call.1} parent=1 // pred_check_branch
      %69 = sbr.rel (0) target = $region41
    $region40: #{tpu_custom_call.1} parent=1 // pred_region
      %s71 = ssub.s32 1024, 1024
      %72 = vsyncadd [#allocation9], %s71
      %s73 = sshll.u32 [#allocation8], 4
      %s74 = int_to_ptr.vmem [resolvable:$true] %s73
      %79 = dma.hbm_to_vmem [thread:$0]  %s9, 1024, %s74, [#allocation9], 64, 64, 4
    $region41: #{tpu_custom_call.1} parent=1 // pred_fallthru
      _
    // Predicated region
    $region42: #{tpu_custom_call.1} parent=1 // pred_check
      _
    $region43: #{tpu_custom_call.1} parent=1 // pred_check_branch
      %81 = sbr.rel (0) target = $region45
    $region44: #{tpu_custom_call.1} parent=1 // pred_region
      _
    $region45: #{tpu_custom_call.1} parent=1 // pred_fallthru
      _
    // Predicated region
    $region46: #{tpu_custom_call.1} parent=1 // pred_check
      _
    $region47: #{tpu_custom_call.1} parent=1 // pred_check_branch
      %83 = sbr.rel (0) target = $region49
    $region48: #{tpu_custom_call.1} parent=1 // pred_region
      %s85 = ssub.s32 1024, 1024
      %86 = vsyncadd [#allocation9], %s85
      %s87 = sshll.u32 [#allocation10], 4
      %s88 = int_to_ptr.vmem [resolvable:$true] %s87
      %93 = dma.hbm_to_vmem [thread:$0]  %s11, 1024, %s88, [#allocation9], 64, 64, 4
    $region49: #{tpu_custom_call.1} parent=1 // pred_fallthru
      _
    // Predicated region
    $region50: #{tpu_custom_call.1} parent=1 // pred_check
      _
    $region51: #{tpu_custom_call.1} parent=1 // pred_check_branch
      %95 = sbr.rel (0) target = $region53
    $region52: #{tpu_custom_call.1} parent=1 // pred_region
      _
    $region53: #{tpu_custom_call.1} parent=1 // pred_fallthru
      _
    // Predicated region
    $region54: #{tpu_custom_call.1} parent=1 // pred_check
      _
    $region55: #{tpu_custom_call.1} parent=1 // pred_check_branch
      %97 = sbr.rel (0) target = $region57
    $region56: #{tpu_custom_call.1} parent=1 // pred_region
      %98 = dma.done [#allocation3], 1024
    $region57: #{tpu_custom_call.1} parent=1 // pred_fallthru
      _
    // Predicated region
    $region58: #{tpu_custom_call.1} parent=1 // pred_check
      _
    $region59: #{tpu_custom_call.1} parent=1 // pred_check_branch
      %100 = sbr.rel (0) target = $region61
    $region60: #{tpu_custom_call.1} parent=1 // pred_region
      %101 = dma.done [#allocation6], 16384
    $region61: #{tpu_custom_call.1} parent=1 // pred_fallthru
      _
    // Predicated region
    $region62: #{tpu_custom_call.1} parent=1 // pred_check
      _
    $region63: #{tpu_custom_call.1} parent=1 // pred_check_branch
      %103 = sbr.rel (0) target = $region65
    $region64: #{tpu_custom_call.1} parent=1 // pred_region
      %104 = dma.done [#allocation6], 2048
    $region65: #{tpu_custom_call.1} parent=1 // pred_fallthru
      _
    // Predicated region
    $region66: #{tpu_custom_call.1} parent=1 // pred_check
      _
    $region67: #{tpu_custom_call.1} parent=1 // pred_check_branch
      %106 = sbr.rel (0) target = $region69
    $region68: #{tpu_custom_call.1} parent=1 // pred_region
      %107 = dma.done [#allocation9], 1024
    $region69: #{tpu_custom_call.1} parent=1 // pred_fallthru
      _
    // Predicated region
    $region70: #{tpu_custom_call.1} parent=1 // pred_check
      _
    $region71: #{tpu_custom_call.1} parent=1 // pred_check_branch
      %109 = sbr.rel (0) target = $region73
    $region72: #{tpu_custom_call.1} parent=1 // pred_region
      %110 = dma.done [#allocation9], 1024
    $region73: #{tpu_custom_call.1} parent=1 // pred_fallthru
      _
    %v112 = vld [vmem:[#allocation2] sm:$0xff]
    %v113 = vld [vmem:[#allocation2 + $0x8] sm:$0xff]
    %v114 = vld [vmem:[#allocation2 + $0x10] sm:$0xff]
    %v115 = vld [vmem:[#allocation2 + $0x18] sm:$0xff]
    %v116 = vld [vmem:[#allocation2 + $0x20] sm:$0xff]
    %v117 = vld [vmem:[#allocation2 + $0x28] sm:$0xff]
    %v118 = vld [vmem:[#allocation2 + $0x30] sm:$0xff]
    %v119 = vld [vmem:[#allocation2 + $0x38] sm:$0xff]
    %v120 = vmax.f32 %v112, 0.0
    %v121 = vmax.f32 %v113, 0.0
    %v122 = vmax.f32 %v114, 0.0
    %v123 = vmax.f32 %v115, 0.0
    %v124 = vmax.f32 %v116, 0.0
    %v125 = vmax.f32 %v117, 0.0
    %v126 = vmax.f32 %v118, 0.0
    %v127 = vmax.f32 %v119, 0.0
    %v128 = vpack.c.bf16 %v120, %v120
    %v129 = vpack.c.bf16 %v121, %v121
    %v130 = vpack.c.bf16 %v122, %v122
    %v131 = vpack.c.bf16 %v123, %v123
    %v132 = vpack.c.bf16 %v124, %v124
    %v133 = vpack.c.bf16 %v125, %v125
    %v134 = vpack.c.bf16 %v126, %v126
    %v135 = vpack.c.bf16 %v127, %v127
    %v136 = vld [vmem:[#allocation5] sm:$0xff]
    %v137 = vld [vmem:[#allocation5 + $0x8] sm:$0xff]
    %v138 = vld [vmem:[#allocation5 + $0x10] sm:$0xff]
    %v139 = vld [vmem:[#allocation5 + $0x18] sm:$0xff]
    %v140 = vld [vmem:[#allocation5 + $0x20] sm:$0xff]
    %v141 = vld [vmem:[#allocation5 + $0x28] sm:$0xff]
    %v142 = vld [vmem:[#allocation5 + $0x30] sm:$0xff]
    %v143 = vld [vmem:[#allocation5 + $0x38] sm:$0xff]
    %v144 = vld [vmem:[#allocation5 + $0x40] sm:$0xff]
    %v145 = vld [vmem:[#allocation5 + $0x48] sm:$0xff]
    %v146 = vld [vmem:[#allocation5 + $0x50] sm:$0xff]
    %v147 = vld [vmem:[#allocation5 + $0x58] sm:$0xff]
    %v148 = vld [vmem:[#allocation5 + $0x60] sm:$0xff]
    %v149 = vld [vmem:[#allocation5 + $0x68] sm:$0xff]
    %v150 = vld [vmem:[#allocation5 + $0x70] sm:$0xff]
    %v151 = vld [vmem:[#allocation5 + $0x78] sm:$0xff]
    %v152 = vld [vmem:[#allocation5 + $0x80] sm:$0xff]
    %v153 = vld [vmem:[#allocation5 + $0x88] sm:$0xff]
    %v154 = vld [vmem:[#allocation5 + $0x90] sm:$0xff]
    %v155 = vld [vmem:[#allocation5 + $0x98] sm:$0xff]
    %v156 = vld [vmem:[#allocation5 + $0xa0] sm:$0xff]
    %v157 = vld [vmem:[#allocation5 + $0xa8] sm:$0xff]
    %v158 = vld [vmem:[#allocation5 + $0xb0] sm:$0xff]
    %v159 = vld [vmem:[#allocation5 + $0xb8] sm:$0xff]
    %v160 = vld [vmem:[#allocation5 + $0xc0] sm:$0xff]
    %v161 = vld [vmem:[#allocation5 + $0xc8] sm:$0xff]
    %v162 = vld [vmem:[#allocation5 + $0xd0] sm:$0xff]
    %v163 = vld [vmem:[#allocation5 + $0xd8] sm:$0xff]
    %v164 = vld [vmem:[#allocation5 + $0xe0] sm:$0xff]
    %v165 = vld [vmem:[#allocation5 + $0xe8] sm:$0xff]
    %v166 = vld [vmem:[#allocation5 + $0xf0] sm:$0xff]
    %v167 = vld [vmem:[#allocation5 + $0xf8] sm:$0xff]
    %v168 = vld [vmem:[#allocation5 + $0x100] sm:$0xff]
    %v169 = vld [vmem:[#allocation5 + $0x108] sm:$0xff]
    %v170 = vld [vmem:[#allocation5 + $0x110] sm:$0xff]
    %v171 = vld [vmem:[#allocation5 + $0x118] sm:$0xff]
    %v172 = vld [vmem:[#allocation5 + $0x120] sm:$0xff]
    %v173 = vld [vmem:[#allocation5 + $0x128] sm:$0xff]
    %v174 = vld [vmem:[#allocation5 + $0x130] sm:$0xff]
    %v175 = vld [vmem:[#allocation5 + $0x138] sm:$0xff]
    %v176 = vld [vmem:[#allocation5 + $0x140] sm:$0xff]
    %v177 = vld [vmem:[#allocation5 + $0x148] sm:$0xff]
    %v178 = vld [vmem:[#allocation5 + $0x150] sm:$0xff]
    %v179 = vld [vmem:[#allocation5 + $0x158] sm:$0xff]
    %v180 = vld [vmem:[#allocation5 + $0x160] sm:$0xff]
    %v181 = vld [vmem:[#allocation5 + $0x168] sm:$0xff]
    %v182 = vld [vmem:[#allocation5 + $0x170] sm:$0xff]
    %v183 = vld [vmem:[#allocation5 + $0x178] sm:$0xff]
    %v184 = vld [vmem:[#allocation5 + $0x180] sm:$0xff]
    %v185 = vld [vmem:[#allocation5 + $0x188] sm:$0xff]
    %v186 = vld [vmem:[#allocation5 + $0x190] sm:$0xff]
    %v187 = vld [vmem:[#allocation5 + $0x198] sm:$0xff]
    %v188 = vld [vmem:[#allocation5 + $0x1a0] sm:$0xff]
    %v189 = vld [vmem:[#allocation5 + $0x1a8] sm:$0xff]
    %v190 = vld [vmem:[#allocation5 + $0x1b0] sm:$0xff]
    %v191 = vld [vmem:[#allocation5 + $0x1b8] sm:$0xff]
    %v192 = vld [vmem:[#allocation5 + $0x1c0] sm:$0xff]
    %v193 = vld [vmem:[#allocation5 + $0x1c8] sm:$0xff]
    %v194 = vld [vmem:[#allocation5 + $0x1d0] sm:$0xff]
    %v195 = vld [vmem:[#allocation5 + $0x1d8] sm:$0xff]
    %v196 = vld [vmem:[#allocation5 + $0x1e0] sm:$0xff]
    %v197 = vld [vmem:[#allocation5 + $0x1e8] sm:$0xff]
    %v198 = vld [vmem:[#allocation5 + $0x1f0] sm:$0xff]
    %v199 = vld [vmem:[#allocation5 + $0x1f8] sm:$0xff]
    %v200 = vld [vmem:[#allocation5 + $0x200] sm:$0xff]
    %v201 = vld [vmem:[#allocation5 + $0x208] sm:$0xff]
    %v202 = vld [vmem:[#allocation5 + $0x210] sm:$0xff]
    %v203 = vld [vmem:[#allocation5 + $0x218] sm:$0xff]
    %v204 = vld [vmem:[#allocation5 + $0x220] sm:$0xff]
    %v205 = vld [vmem:[#allocation5 + $0x228] sm:$0xff]
    %v206 = vld [vmem:[#allocation5 + $0x230] sm:$0xff]
    %v207 = vld [vmem:[#allocation5 + $0x238] sm:$0xff]
    %v208 = vld [vmem:[#allocation5 + $0x240] sm:$0xff]
    %v209 = vld [vmem:[#allocation5 + $0x248] sm:$0xff]
    %v210 = vld [vmem:[#allocation5 + $0x250] sm:$0xff]
    %v211 = vld [vmem:[#allocation5 + $0x258] sm:$0xff]
    %v212 = vld [vmem:[#allocation5 + $0x260] sm:$0xff]
    %v213 = vld [vmem:[#allocation5 + $0x268] sm:$0xff]
    %v214 = vld [vmem:[#allocation5 + $0x270] sm:$0xff]
    %v215 = vld [vmem:[#allocation5 + $0x278] sm:$0xff]
    %v216 = vld [vmem:[#allocation5 + $0x280] sm:$0xff]
    %v217 = vld [vmem:[#allocation5 + $0x288] sm:$0xff]
    %v218 = vld [vmem:[#allocation5 + $0x290] sm:$0xff]
    %v219 = vld [vmem:[#allocation5 + $0x298] sm:$0xff]
    %v220 = vld [vmem:[#allocation5 + $0x2a0] sm:$0xff]
    %v221 = vld [vmem:[#allocation5 + $0x2a8] sm:$0xff]
    %v222 = vld [vmem:[#allocation5 + $0x2b0] sm:$0xff]
    %v223 = vld [vmem:[#allocation5 + $0x2b8] sm:$0xff]
    %v224 = vld [vmem:[#allocation5 + $0x2c0] sm:$0xff]
    %v225 = vld [vmem:[#allocation5 + $0x2c8] sm:$0xff]
    %v226 = vld [vmem:[#allocation5 + $0x2d0] sm:$0xff]
    %v227 = vld [vmem:[#allocation5 + $0x2d8] sm:$0xff]
    %v228 = vld [vmem:[#allocation5 + $0x2e0] sm:$0xff]
    %v229 = vld [vmem:[#allocation5 + $0x2e8] sm:$0xff]
    %v230 = vld [vmem:[#allocation5 + $0x2f0] sm:$0xff]
    %v231 = vld [vmem:[#allocation5 + $0x2f8] sm:$0xff]
    %v232 = vld [vmem:[#allocation5 + $0x300] sm:$0xff]
    %v233 = vld [vmem:[#allocation5 + $0x308] sm:$0xff]
    %v234 = vld [vmem:[#allocation5 + $0x310] sm:$0xff]
    %v235 = vld [vmem:[#allocation5 + $0x318] sm:$0xff]
    %v236 = vld [vmem:[#allocation5 + $0x320] sm:$0xff]
    %v237 = vld [vmem:[#allocation5 + $0x328] sm:$0xff]
    %v238 = vld [vmem:[#allocation5 + $0x330] sm:$0xff]
    %v239 = vld [vmem:[#allocation5 + $0x338] sm:$0xff]
    %v240 = vld [vmem:[#allocation5 + $0x340] sm:$0xff]
    %v241 = vld [vmem:[#allocation5 + $0x348] sm:$0xff]
    %v242 = vld [vmem:[#allocation5 + $0x350] sm:$0xff]
    %v243 = vld [vmem:[#allocation5 + $0x358] sm:$0xff]
    %v244 = vld [vmem:[#allocation5 + $0x360] sm:$0xff]
    %v245 = vld [vmem:[#allocation5 + $0x368] sm:$0xff]
    %v246 = vld [vmem:[#allocation5 + $0x370] sm:$0xff]
    %v247 = vld [vmem:[#allocation5 + $0x378] sm:$0xff]
    %v248 = vld [vmem:[#allocation5 + $0x380] sm:$0xff]
    %v249 = vld [vmem:[#allocation5 + $0x388] sm:$0xff]
    %v250 = vld [vmem:[#allocation5 + $0x390] sm:$0xff]
    %v251 = vld [vmem:[#allocation5 + $0x398] sm:$0xff]
    %v252 = vld [vmem:[#allocation5 + $0x3a0] sm:$0xff]
    %v253 = vld [vmem:[#allocation5 + $0x3a8] sm:$0xff]
    %v254 = vld [vmem:[#allocation5 + $0x3b0] sm:$0xff]
    %v255 = vld [vmem:[#allocation5 + $0x3b8] sm:$0xff]
    %v256 = vld [vmem:[#allocation5 + $0x3c0] sm:$0xff]
    %v257 = vld [vmem:[#allocation5 + $0x3c8] sm:$0xff]
    %v258 = vld [vmem:[#allocation5 + $0x3d0] sm:$0xff]
    %v259 = vld [vmem:[#allocation5 + $0x3d8] sm:$0xff]
    %v260 = vld [vmem:[#allocation5 + $0x3e0] sm:$0xff]
    %v261 = vld [vmem:[#allocation5 + $0x3e8] sm:$0xff]
    %v262 = vld [vmem:[#allocation5 + $0x3f0] sm:$0xff]
    %v263 = vld [vmem:[#allocation5 + $0x3f8] sm:$0xff]
    %v264 = vld [vmem:[%s2] sm:$0x3]
    %v266 = vlaneseq
    %v267 = vshrl.u32 %v266, 7
    %v268 = vsub.s32 0, %v267
    %v269 = vrot.slane %v264, %v268
    %v270 = vlaneseq
    %v271 = vshrl.u32 %v270, 7
    %v272 = vsub.s32 1, %v271
    %v273 = vrot.slane %v264, %v272
    %v404 = vunpack.c.l.b16 %v136
    %v405 = vunpack.c.h.b16 %v136
    %v406 = vunpack.c.l.b16 %v137
    %v407 = vunpack.c.h.b16 %v137
    %v408 = vunpack.c.l.b16 %v138
    %v409 = vunpack.c.h.b16 %v138
    %v410 = vunpack.c.l.b16 %v139
    %v411 = vunpack.c.h.b16 %v139
    %v412 = vunpack.c.l.b16 %v140
    %v413 = vunpack.c.h.b16 %v140
    %v414 = vunpack.c.l.b16 %v141
    %v415 = vunpack.c.h.b16 %v141
    %v416 = vunpack.c.l.b16 %v142
    %v417 = vunpack.c.h.b16 %v142
    %v418 = vunpack.c.l.b16 %v143
    %v419 = vunpack.c.h.b16 %v143
    %v420 = vunpack.c.l.b16 %v144
    %v421 = vunpack.c.h.b16 %v144
    %v422 = vunpack.c.l.b16 %v145
    %v423 = vunpack.c.h.b16 %v145
    %v424 = vunpack.c.l.b16 %v146
    %v425 = vunpack.c.h.b16 %v146
    %v426 = vunpack.c.l.b16 %v147
    %v427 = vunpack.c.h.b16 %v147
    %v428 = vunpack.c.l.b16 %v148
    %v429 = vunpack.c.h.b16 %v148
    %v430 = vunpack.c.l.b16 %v149
    %v431 = vunpack.c.h.b16 %v149
    %v432 = vunpack.c.l.b16 %v150
    %v433 = vunpack.c.h.b16 %v150
    %v434 = vunpack.c.l.b16 %v151
    %v435 = vunpack.c.h.b16 %v151
    %v436 = vunpack.c.l.b16 %v152
    %v437 = vunpack.c.h.b16 %v152
    %v438 = vunpack.c.l.b16 %v153
    %v439 = vunpack.c.h.b16 %v153
    %v440 = vunpack.c.l.b16 %v154
    %v441 = vunpack.c.h.b16 %v154
    %v442 = vunpack.c.l.b16 %v155
    %v443 = vunpack.c.h.b16 %v155
    %v444 = vunpack.c.l.b16 %v156
    %v445 = vunpack.c.h.b16 %v156
    %v446 = vunpack.c.l.b16 %v157
    %v447 = vunpack.c.h.b16 %v157
    %v448 = vunpack.c.l.b16 %v158
    %v449 = vunpack.c.h.b16 %v158
    %v450 = vunpack.c.l.b16 %v159
    %v451 = vunpack.c.h.b16 %v159
    %v452 = vunpack.c.l.b16 %v160
    %v453 = vunpack.c.h.b16 %v160
    %v454 = vunpack.c.l.b16 %v161
    %v455 = vunpack.c.h.b16 %v161
    %v456 = vunpack.c.l.b16 %v162
    %v457 = vunpack.c.h.b16 %v162
    %v458 = vunpack.c.l.b16 %v163
    %v459 = vunpack.c.h.b16 %v163
    %v460 = vunpack.c.l.b16 %v164
    %v461 = vunpack.c.h.b16 %v164
    %v462 = vunpack.c.l.b16 %v165
    %v463 = vunpack.c.h.b16 %v165
    %v464 = vunpack.c.l.b16 %v166
    %v465 = vunpack.c.h.b16 %v166
    %v466 = vunpack.c.l.b16 %v167
    %v467 = vunpack.c.h.b16 %v167
    %v468 = vunpack.c.l.b16 %v168
    %v469 = vunpack.c.h.b16 %v168
    %v470 = vunpack.c.l.b16 %v169
    %v471 = vunpack.c.h.b16 %v169
    %v472 = vunpack.c.l.b16 %v170
    %v473 = vunpack.c.h.b16 %v170
    %v474 = vunpack.c.l.b16 %v171
    %v475 = vunpack.c.h.b16 %v171
    %v476 = vunpack.c.l.b16 %v172
    %v477 = vunpack.c.h.b16 %v172
    %v478 = vunpack.c.l.b16 %v173
    %v479 = vunpack.c.h.b16 %v173
    %v480 = vunpack.c.l.b16 %v174
    %v481 = vunpack.c.h.b16 %v174
    %v482 = vunpack.c.l.b16 %v175
    %v483 = vunpack.c.h.b16 %v175
    %v484 = vunpack.c.l.b16 %v176
    %v485 = vunpack.c.h.b16 %v176
    %v486 = vunpack.c.l.b16 %v177
    %v487 = vunpack.c.h.b16 %v177
    %v488 = vunpack.c.l.b16 %v178
    %v489 = vunpack.c.h.b16 %v178
    %v490 = vunpack.c.l.b16 %v179
    %v491 = vunpack.c.h.b16 %v179
    %v492 = vunpack.c.l.b16 %v180
    %v493 = vunpack.c.h.b16 %v180
    %v494 = vunpack.c.l.b16 %v181
    %v495 = vunpack.c.h.b16 %v181
    %v496 = vunpack.c.l.b16 %v182
    %v497 = vunpack.c.h.b16 %v182
    %v498 = vunpack.c.l.b16 %v183
    %v499 = vunpack.c.h.b16 %v183
    %v500 = vunpack.c.l.b16 %v184
    %v501 = vunpack.c.h.b16 %v184
    %v502 = vunpack.c.l.b16 %v185
    %v503 = vunpack.c.h.b16 %v185
    %v504 = vunpack.c.l.b16 %v186
    %v505 = vunpack.c.h.b16 %v186
    %v506 = vunpack.c.l.b16 %v187
    %v507 = vunpack.c.h.b16 %v187
    %v508 = vunpack.c.l.b16 %v188
    %v509 = vunpack.c.h.b16 %v188
    %v510 = vunpack.c.l.b16 %v189
    %v511 = vunpack.c.h.b16 %v189
    %v512 = vunpack.c.l.b16 %v190
    %v513 = vunpack.c.h.b16 %v190
    %v514 = vunpack.c.l.b16 %v191
    %v515 = vunpack.c.h.b16 %v191
    %v516 = vunpack.c.l.b16 %v192
    %v517 = vunpack.c.h.b16 %v192
    %v518 = vunpack.c.l.b16 %v193
    %v519 = vunpack.c.h.b16 %v193
    %v520 = vunpack.c.l.b16 %v194
    %v521 = vunpack.c.h.b16 %v194
    %v522 = vunpack.c.l.b16 %v195
    %v523 = vunpack.c.h.b16 %v195
    %v524 = vunpack.c.l.b16 %v196
    %v525 = vunpack.c.h.b16 %v196
    %v526 = vunpack.c.l.b16 %v197
    %v527 = vunpack.c.h.b16 %v197
    %v528 = vunpack.c.l.b16 %v198
    %v529 = vunpack.c.h.b16 %v198
    %v530 = vunpack.c.l.b16 %v199
    %v531 = vunpack.c.h.b16 %v199
    %v532 = vunpack.c.l.b16 %v200
    %v533 = vunpack.c.h.b16 %v200
    %v534 = vunpack.c.l.b16 %v201
    %v535 = vunpack.c.h.b16 %v201
    %v536 = vunpack.c.l.b16 %v202
    %v537 = vunpack.c.h.b16 %v202
    %v538 = vunpack.c.l.b16 %v203
    %v539 = vunpack.c.h.b16 %v203
    %v540 = vunpack.c.l.b16 %v204
    %v541 = vunpack.c.h.b16 %v204
    %v542 = vunpack.c.l.b16 %v205
    %v543 = vunpack.c.h.b16 %v205
    %v544 = vunpack.c.l.b16 %v206
    %v545 = vunpack.c.h.b16 %v206
    %v546 = vunpack.c.l.b16 %v207
    %v547 = vunpack.c.h.b16 %v207
    %v548 = vunpack.c.l.b16 %v208
    %v549 = vunpack.c.h.b16 %v208
    %v550 = vunpack.c.l.b16 %v209
    %v551 = vunpack.c.h.b16 %v209
    %v552 = vunpack.c.l.b16 %v210
    %v553 = vunpack.c.h.b16 %v210
    %v554 = vunpack.c.l.b16 %v211
    %v555 = vunpack.c.h.b16 %v211
    %v556 = vunpack.c.l.b16 %v212
    %v557 = vunpack.c.h.b16 %v212
    %v558 = vunpack.c.l.b16 %v213
    %v559 = vunpack.c.h.b16 %v213
    %v560 = vunpack.c.l.b16 %v214
    %v561 = vunpack.c.h.b16 %v214
    %v562 = vunpack.c.l.b16 %v215
    %v563 = vunpack.c.h.b16 %v215
    %v564 = vunpack.c.l.b16 %v216
    %v565 = vunpack.c.h.b16 %v216
    %v566 = vunpack.c.l.b16 %v217
    %v567 = vunpack.c.h.b16 %v217
    %v568 = vunpack.c.l.b16 %v218
    %v569 = vunpack.c.h.b16 %v218
    %v570 = vunpack.c.l.b16 %v219
    %v571 = vunpack.c.h.b16 %v219
    %v572 = vunpack.c.l.b16 %v220
    %v573 = vunpack.c.h.b16 %v220
    %v574 = vunpack.c.l.b16 %v221
    %v575 = vunpack.c.h.b16 %v221
    %v576 = vunpack.c.l.b16 %v222
    %v577 = vunpack.c.h.b16 %v222
    %v578 = vunpack.c.l.b16 %v223
    %v579 = vunpack.c.h.b16 %v223
    %v580 = vunpack.c.l.b16 %v224
    %v581 = vunpack.c.h.b16 %v224
    %v582 = vunpack.c.l.b16 %v225
    %v583 = vunpack.c.h.b16 %v225
    %v584 = vunpack.c.l.b16 %v226
    %v585 = vunpack.c.h.b16 %v226
    %v586 = vunpack.c.l.b16 %v227
    %v587 = vunpack.c.h.b16 %v227
    %v588 = vunpack.c.l.b16 %v228
    %v589 = vunpack.c.h.b16 %v228
    %v590 = vunpack.c.l.b16 %v229
    %v591 = vunpack.c.h.b16 %v229
    %v592 = vunpack.c.l.b16 %v230
    %v593 = vunpack.c.h.b16 %v230
    %v594 = vunpack.c.l.b16 %v231
    %v595 = vunpack.c.h.b16 %v231
    %v596 = vunpack.c.l.b16 %v232
    %v597 = vunpack.c.h.b16 %v232
    %v598 = vunpack.c.l.b16 %v233
    %v599 = vunpack.c.h.b16 %v233
    %v600 = vunpack.c.l.b16 %v234
    %v601 = vunpack.c.h.b16 %v234
    %v602 = vunpack.c.l.b16 %v235
    %v603 = vunpack.c.h.b16 %v235
    %v604 = vunpack.c.l.b16 %v236
    %v605 = vunpack.c.h.b16 %v236
    %v606 = vunpack.c.l.b16 %v237
    %v607 = vunpack.c.h.b16 %v237
    %v608 = vunpack.c.l.b16 %v238
    %v609 = vunpack.c.h.b16 %v238
    %v610 = vunpack.c.l.b16 %v239
    %v611 = vunpack.c.h.b16 %v239
    %v612 = vunpack.c.l.b16 %v240
    %v613 = vunpack.c.h.b16 %v240
    %v614 = vunpack.c.l.b16 %v241
    %v615 = vunpack.c.h.b16 %v241
    %v616 = vunpack.c.l.b16 %v242
    %v617 = vunpack.c.h.b16 %v242
    %v618 = vunpack.c.l.b16 %v243
    %v619 = vunpack.c.h.b16 %v243
    %v620 = vunpack.c.l.b16 %v244
    %v621 = vunpack.c.h.b16 %v244
    %v622 = vunpack.c.l.b16 %v245
    %v623 = vunpack.c.h.b16 %v245
    %v624 = vunpack.c.l.b16 %v246
    %v625 = vunpack.c.h.b16 %v246
    %v626 = vunpack.c.l.b16 %v247
    %v627 = vunpack.c.h.b16 %v247
    %v628 = vunpack.c.l.b16 %v248
    %v629 = vunpack.c.h.b16 %v248
    %v630 = vunpack.c.l.b16 %v249
    %v631 = vunpack.c.h.b16 %v249
    %v632 = vunpack.c.l.b16 %v250
    %v633 = vunpack.c.h.b16 %v250
    %v634 = vunpack.c.l.b16 %v251
    %v635 = vunpack.c.h.b16 %v251
    %v636 = vunpack.c.l.b16 %v252
    %v637 = vunpack.c.h.b16 %v252
    %v638 = vunpack.c.l.b16 %v253
    %v639 = vunpack.c.h.b16 %v253
    %v640 = vunpack.c.l.b16 %v254
    %v641 = vunpack.c.h.b16 %v254
    %v642 = vunpack.c.l.b16 %v255
    %v643 = vunpack.c.h.b16 %v255
    %v644 = vunpack.c.l.b16 %v256
    %v645 = vunpack.c.h.b16 %v256
    %v646 = vunpack.c.l.b16 %v257
    %v647 = vunpack.c.h.b16 %v257
    %v648 = vunpack.c.l.b16 %v258
    %v649 = vunpack.c.h.b16 %v258
    %v650 = vunpack.c.l.b16 %v259
    %v651 = vunpack.c.h.b16 %v259
    %v652 = vunpack.c.l.b16 %v260
    %v653 = vunpack.c.h.b16 %v260
    %v654 = vunpack.c.l.b16 %v261
    %v655 = vunpack.c.h.b16 %v261
    %v656 = vunpack.c.l.b16 %v262
    %v657 = vunpack.c.h.b16 %v262
    %v658 = vunpack.c.l.b16 %v263
    %v659 = vunpack.c.h.b16 %v263
    %v660 = vpack.c.b16 %v406, %v404
    %v661 = vpack.c.b16 %v407, %v405
    %v662 = vpack.c.b16 %v410, %v408
    %v663 = vpack.c.b16 %v411, %v409
    %v664 = vpack.c.b16 %v414, %v412
    %v665 = vpack.c.b16 %v415, %v413
    %v666 = vpack.c.b16 %v418, %v416
    %v667 = vpack.c.b16 %v419, %v417
    %v668 = vpack.c.b16 %v422, %v420
    %v669 = vpack.c.b16 %v423, %v421
    %v670 = vpack.c.b16 %v426, %v424
    %v671 = vpack.c.b16 %v427, %v425
    %v672 = vpack.c.b16 %v430, %v428
    %v673 = vpack.c.b16 %v431, %v429
    %v674 = vpack.c.b16 %v434, %v432
    %v675 = vpack.c.b16 %v435, %v433
    %v676 = vpack.c.b16 %v438, %v436
    %v677 = vpack.c.b16 %v439, %v437
    %v678 = vpack.c.b16 %v442, %v440
    %v679 = vpack.c.b16 %v443, %v441
    %v680 = vpack.c.b16 %v446, %v444
    %v681 = vpack.c.b16 %v447, %v445
    %v682 = vpack.c.b16 %v450, %v448
    %v683 = vpack.c.b16 %v451, %v449
    %v684 = vpack.c.b16 %v454, %v452
    %v685 = vpack.c.b16 %v455, %v453
    %v686 = vpack.c.b16 %v458, %v456
    %v687 = vpack.c.b16 %v459, %v457
    %v688 = vpack.c.b16 %v462, %v460
    %v689 = vpack.c.b16 %v463, %v461
    %v690 = vpack.c.b16 %v466, %v464
    %v691 = vpack.c.b16 %v467, %v465
    %v692 = vpack.c.b16 %v470, %v468
    %v693 = vpack.c.b16 %v471, %v469
    %v694 = vpack.c.b16 %v474, %v472
    %v695 = vpack.c.b16 %v475, %v473
    %v696 = vpack.c.b16 %v478, %v476
    %v697 = vpack.c.b16 %v479, %v477
    %v698 = vpack.c.b16 %v482, %v480
    %v699 = vpack.c.b16 %v483, %v481
    %v700 = vpack.c.b16 %v486, %v484
    %v701 = vpack.c.b16 %v487, %v485
    %v702 = vpack.c.b16 %v490, %v488
    %v703 = vpack.c.b16 %v491, %v489
    %v704 = vpack.c.b16 %v494, %v492
    %v705 = vpack.c.b16 %v495, %v493
    %v706 = vpack.c.b16 %v498, %v496
    %v707 = vpack.c.b16 %v499, %v497
    %v708 = vpack.c.b16 %v502, %v500
    %v709 = vpack.c.b16 %v503, %v501
    %v710 = vpack.c.b16 %v506, %v504
    %v711 = vpack.c.b16 %v507, %v505
    %v712 = vpack.c.b16 %v510, %v508
    %v713 = vpack.c.b16 %v511, %v509
    %v714 = vpack.c.b16 %v514, %v512
    %v715 = vpack.c.b16 %v515, %v513
    %v716 = vpack.c.b16 %v518, %v516
    %v717 = vpack.c.b16 %v519, %v517
    %v718 = vpack.c.b16 %v522, %v520
    %v719 = vpack.c.b16 %v523, %v521
    %v720 = vpack.c.b16 %v526, %v524
    %v721 = vpack.c.b16 %v527, %v525
    %v722 = vpack.c.b16 %v530, %v528
    %v723 = vpack.c.b16 %v531, %v529
    %v724 = vpack.c.b16 %v534, %v532
    %v725 = vpack.c.b16 %v535, %v533
    %v726 = vpack.c.b16 %v538, %v536
    %v727 = vpack.c.b16 %v539, %v537
    %v728 = vpack.c.b16 %v542, %v540
    %v729 = vpack.c.b16 %v543, %v541
    %v730 = vpack.c.b16 %v546, %v544
    %v731 = vpack.c.b16 %v547, %v545
    %v732 = vpack.c.b16 %v550, %v548
    %v733 = vpack.c.b16 %v551, %v549
    %v734 = vpack.c.b16 %v554, %v552
    %v735 = vpack.c.b16 %v555, %v553
    %v736 = vpack.c.b16 %v558, %v556
    %v737 = vpack.c.b16 %v559, %v557
    %v738 = vpack.c.b16 %v562, %v560
    %v739 = vpack.c.b16 %v563, %v561
    %v740 = vpack.c.b16 %v566, %v564
    %v741 = vpack.c.b16 %v567, %v565
    %v742 = vpack.c.b16 %v570, %v568
    %v743 = vpack.c.b16 %v571, %v569
    %v744 = vpack.c.b16 %v574, %v572
    %v745 = vpack.c.b16 %v575, %v573
    %v746 = vpack.c.b16 %v578, %v576
    %v747 = vpack.c.b16 %v579, %v577
    %v748 = vpack.c.b16 %v582, %v580
    %v749 = vpack.c.b16 %v583, %v581
    %v750 = vpack.c.b16 %v586, %v584
    %v751 = vpack.c.b16 %v587, %v585
    %v752 = vpack.c.b16 %v590, %v588
    %v753 = vpack.c.b16 %v591, %v589
    %v754 = vpack.c.b16 %v594, %v592
    %v755 = vpack.c.b16 %v595, %v593
    %v756 = vpack.c.b16 %v598, %v596
    %v757 = vpack.c.b16 %v599, %v597
    %v758 = vpack.c.b16 %v602, %v600
    %v759 = vpack.c.b16 %v603, %v601
    %v760 = vpack.c.b16 %v606, %v604
    %v761 = vpack.c.b16 %v607, %v605
    %v762 = vpack.c.b16 %v610, %v608
    %v763 = vpack.c.b16 %v611, %v609
    %v764 = vpack.c.b16 %v614, %v612
    %v765 = vpack.c.b16 %v615, %v613
    %v766 = vpack.c.b16 %v618, %v616
    %v767 = vpack.c.b16 %v619, %v617
    %v768 = vpack.c.b16 %v622, %v620
    %v769 = vpack.c.b16 %v623, %v621
    %v770 = vpack.c.b16 %v626, %v624
    %v771 = vpack.c.b16 %v627, %v625
    %v772 = vpack.c.b16 %v630, %v628
    %v773 = vpack.c.b16 %v631, %v629
    %v774 = vpack.c.b16 %v634, %v632
    %v775 = vpack.c.b16 %v635, %v633
    %v776 = vpack.c.b16 %v638, %v636
    %v777 = vpack.c.b16 %v639, %v637
    %v778 = vpack.c.b16 %v642, %v640
    %v779 = vpack.c.b16 %v643, %v641
    %v780 = vpack.c.b16 %v646, %v644
    %v781 = vpack.c.b16 %v647, %v645
    %v782 = vpack.c.b16 %v650, %v648
    %v783 = vpack.c.b16 %v651, %v649
    %v784 = vpack.c.b16 %v654, %v652
    %v785 = vpack.c.b16 %v655, %v653
    %v786 = vpack.c.b16 %v658, %v656
    %v787 = vpack.c.b16 %v659, %v657
    %916 = vmatprep.subr.bf16.mxu0 %v661
    %917 = vmatpush1.bf16.msra.mxu0 %v660
    %918 = vmatprep.subr.bf16.mxu0 %v663
    %919 = vmatpush1.bf16.msra.mxu0 %v662
    %920 = vmatprep.subr.bf16.mxu0 %v665
    %921 = vmatpush1.bf16.msra.mxu0 %v664
    %922 = vmatprep.subr.bf16.mxu0 %v667
    %923 = vmatpush1.bf16.msra.mxu0 %v666
    %924 = vmatprep.subr.bf16.mxu0 %v669
    %925 = vmatpush1.bf16.msra.mxu0 %v668
    %926 = vmatprep.subr.bf16.mxu0 %v671
    %927 = vmatpush1.bf16.msra.mxu0 %v670
    %928 = vmatprep.subr.bf16.mxu0 %v673
    %929 = vmatpush1.bf16.msra.mxu0 %v672
    %930 = vmatprep.subr.bf16.mxu0 %v675
    %931 = vmatpush1.bf16.msra.mxu0 %v674
    %932 = vmatprep.subr.bf16.mxu0 %v677
    %933 = vmatpush1.bf16.msra.mxu0 %v676
    %934 = vmatprep.subr.bf16.mxu0 %v679
    %935 = vmatpush1.bf16.msra.mxu0 %v678
    %936 = vmatprep.subr.bf16.mxu0 %v681
    %937 = vmatpush1.bf16.msra.mxu0 %v680
    %938 = vmatprep.subr.bf16.mxu0 %v683
    %939 = vmatpush1.bf16.msra.mxu0 %v682
    %940 = vmatprep.subr.bf16.mxu0 %v685
    %941 = vmatpush1.bf16.msra.mxu0 %v684
    %942 = vmatprep.subr.bf16.mxu0 %v687
    %943 = vmatpush1.bf16.msra.mxu0 %v686
    %944 = vmatprep.subr.bf16.mxu0 %v689
    %945 = vmatpush1.bf16.msra.mxu0 %v688
    %946 = vmatprep.subr.bf16.mxu0 %v691
    %947 = vmatpush1.bf16.msra.mxu0 %v690
    %948 = vmatprep.mubr.bf16.mxu0 %v129
    %949 = vmatmul.mubr.bf16.gmra.mrb[0].mxu0 %v128
    %v950 = vpop.f32.mrb[0].mxu0
    %v951 = vadd.f32 %v269, %v950
    %v952 = vpop.f32.mrb[0].mxu0
    %v953 = vadd.f32 %v273, %v952
    %v954 = vpop.f32.mrb[0].mxu0
    %v955 = vpop.f32.mrb[0].mxu0
    %956 = vdwg.mxu0
    %957 = vmatprep.subr.bf16.mxu0 %v693
    %958 = vmatpush1.bf16.msra.mxu0 %v692
    %959 = vmatprep.subr.bf16.mxu0 %v695
    %960 = vmatpush1.bf16.msra.mxu0 %v694
    %961 = vmatprep.subr.bf16.mxu0 %v697
    %962 = vmatpush1.bf16.msra.mxu0 %v696
    %963 = vmatprep.subr.bf16.mxu0 %v699
    %964 = vmatpush1.bf16.msra.mxu0 %v698
    %965 = vmatprep.subr.bf16.mxu0 %v701
    %966 = vmatpush1.bf16.msra.mxu0 %v700
    %967 = vmatprep.subr.bf16.mxu0 %v703
    %968 = vmatpush1.bf16.msra.mxu0 %v702
    %969 = vmatprep.subr.bf16.mxu0 %v705
    %970 = vmatpush1.bf16.msra.mxu0 %v704
    %971 = vmatprep.subr.bf16.mxu0 %v707
    %972 = vmatpush1.bf16.msra.mxu0 %v706
    %973 = vmatprep.subr.bf16.mxu0 %v709
    %974 = vmatpush1.bf16.msra.mxu0 %v708
    %975 = vmatprep.subr.bf16.mxu0 %v711
    %976 = vmatpush1.bf16.msra.mxu0 %v710
    %977 = vmatprep.subr.bf16.mxu0 %v713
    %978 = vmatpush1.bf16.msra.mxu0 %v712
    %979 = vmatprep.subr.bf16.mxu0 %v715
    %980 = vmatpush1.bf16.msra.mxu0 %v714
    %981 = vmatprep.subr.bf16.mxu0 %v717
    %982 = vmatpush1.bf16.msra.mxu0 %v716
    %983 = vmatprep.subr.bf16.mxu0 %v719
    %984 = vmatpush1.bf16.msra.mxu0 %v718
    %985 = vmatprep.subr.bf16.mxu0 %v721
    %986 = vmatpush1.bf16.msra.mxu0 %v720
    %987 = vmatprep.subr.bf16.mxu0 %v723
    %988 = vmatpush1.bf16.msra.mxu0 %v722
    %989 = vmatprep.mubr.bf16.mxu0 %v131
    %990 = vmatmul.mubr.bf16.gmra.mrb[0].mxu0 %v130
    %v991 = vpop.f32.mrb[0].mxu0
    %v992 = vadd.f32 %v951, %v991
    %v993 = vpop.f32.mrb[0].mxu0
    %v994 = vadd.f32 %v953, %v993
    %v995 = vpop.f32.mrb[0].mxu0
    %v996 = vpop.f32.mrb[0].mxu0
    %997 = vdwg.mxu0
    %998 = vmatprep.subr.bf16.mxu0 %v725
    %999 = vmatpush1.bf16.msra.mxu0 %v724
    %1000 = vmatprep.subr.bf16.mxu0 %v727
    %1001 = vmatpush1.bf16.msra.mxu0 %v726
    %1002 = vmatprep.subr.bf16.mxu0 %v729
    %1003 = vmatpush1.bf16.msra.mxu0 %v728
    %1004 = vmatprep.subr.bf16.mxu0 %v731
    %1005 = vmatpush1.bf16.msra.mxu0 %v730
    %1006 = vmatprep.subr.bf16.mxu0 %v733
    %1007 = vmatpush1.bf16.msra.mxu0 %v732
    %1008 = vmatprep.subr.bf16.mxu0 %v735
    %1009 = vmatpush1.bf16.msra.mxu0 %v734
    %1010 = vmatprep.subr.bf16.mxu0 %v737
    %1011 = vmatpush1.bf16.msra.mxu0 %v736
    %1012 = vmatprep.subr.bf16.mxu0 %v739
    %1013 = vmatpush1.bf16.msra.mxu0 %v738
    %1014 = vmatprep.subr.bf16.mxu0 %v741
    %1015 = vmatpush1.bf16.msra.mxu0 %v740
    %1016 = vmatprep.subr.bf16.mxu0 %v743
    %1017 = vmatpush1.bf16.msra.mxu0 %v742
    %1018 = vmatprep.subr.bf16.mxu0 %v745
    %1019 = vmatpush1.bf16.msra.mxu0 %v744
    %1020 = vmatprep.subr.bf16.mxu0 %v747
    %1021 = vmatpush1.bf16.msra.mxu0 %v746
    %1022 = vmatprep.subr.bf16.mxu0 %v749
    %1023 = vmatpush1.bf16.msra.mxu0 %v748
    %1024 = vmatprep.subr.bf16.mxu0 %v751
    %1025 = vmatpush1.bf16.msra.mxu0 %v750
    %1026 = vmatprep.subr.bf16.mxu0 %v753
    %1027 = vmatpush1.bf16.msra.mxu0 %v752
    %1028 = vmatprep.subr.bf16.mxu0 %v755
    %1029 = vmatpush1.bf16.msra.mxu0 %v754
    %1030 = vmatprep.mubr.bf16.mxu0 %v133
    %1031 = vmatmul.mubr.bf16.gmra.mrb[0].mxu0 %v132
    %v1032 = vpop.f32.mrb[0].mxu0
    %v1033 = vadd.f32 %v992, %v1032
    %v1034 = vpop.f32.mrb[0].mxu0
    %v1035 = vadd.f32 %v994, %v1034
    %v1036 = vpop.f32.mrb[0].mxu0
    %v1037 = vpop.f32.mrb[0].mxu0
    %1038 = vdwg.mxu0
    %1039 = vmatprep.subr.bf16.mxu0 %v757
    %1040 = vmatpush1.bf16.msra.mxu0 %v756
    %1041 = vmatprep.subr.bf16.mxu0 %v759
    %1042 = vmatpush1.bf16.msra.mxu0 %v758
    %1043 = vmatprep.subr.bf16.mxu0 %v761
    %1044 = vmatpush1.bf16.msra.mxu0 %v760
    %1045 = vmatprep.subr.bf16.mxu0 %v763
    %1046 = vmatpush1.bf16.msra.mxu0 %v762
    %1047 = vmatprep.subr.bf16.mxu0 %v765
    %1048 = vmatpush1.bf16.msra.mxu0 %v764
    %1049 = vmatprep.subr.bf16.mxu0 %v767
    %1050 = vmatpush1.bf16.msra.mxu0 %v766
    %1051 = vmatprep.subr.bf16.mxu0 %v769
    %1052 = vmatpush1.bf16.msra.mxu0 %v768
    %1053 = vmatprep.subr.bf16.mxu0 %v771
    %1054 = vmatpush1.bf16.msra.mxu0 %v770
    %1055 = vmatprep.subr.bf16.mxu0 %v773
    %1056 = vmatpush1.bf16.msra.mxu0 %v772
    %1057 = vmatprep.subr.bf16.mxu0 %v775
    %1058 = vmatpush1.bf16.msra.mxu0 %v774
    %1059 = vmatprep.subr.bf16.mxu0 %v777
    %1060 = vmatpush1.bf16.msra.mxu0 %v776
    %1061 = vmatprep.subr.bf16.mxu0 %v779
    %1062 = vmatpush1.bf16.msra.mxu0 %v778
    %1063 = vmatprep.subr.bf16.mxu0 %v781
    %1064 = vmatpush1.bf16.msra.mxu0 %v780
    %1065 = vmatprep.subr.bf16.mxu0 %v783
    %1066 = vmatpush1.bf16.msra.mxu0 %v782
    %1067 = vmatprep.subr.bf16.mxu0 %v785
    %1068 = vmatpush1.bf16.msra.mxu0 %v784
    %1069 = vmatprep.subr.bf16.mxu0 %v787
    %1070 = vmatpush1.bf16.msra.mxu0 %v786
    %1071 = vmatprep.mubr.bf16.mxu0 %v135
    %1072 = vmatmul.mubr.bf16.gmra.mrb[0].mxu0 %v134
    %v1073 = vpop.f32.mrb[0].mxu0
    %v1074 = vadd.f32 %v1033, %v1073
    %v1075 = vpop.f32.mrb[0].mxu0
    %v1076 = vadd.f32 %v1035, %v1075
    %v1077 = vpop.f32.mrb[0].mxu0
    %v1078 = vpop.f32.mrb[0].mxu0
    %1079 = vdwg.mxu0
    %v1080 = vadd.f32 %v1074, %v1076
    %1081 = vadd.xlane.f32.xlu0 %v1080
    %v1082 = vpop.xlane.xlu0 %1081
    %v1083 = vrcp.pop 256.0
    %v1084 = vmul.f32 %v1082, %v1083
    %v1085 = vsub.f32 %v1074, %v1084
    %v1086 = vsub.f32 %v1076, %v1084
    %v1087 = vmul.f32 %v1085, %v1085
    %v1088 = vmul.f32 %v1086, %v1086
    %v1089 = vadd.f32 %v1087, %v1088
    %1090 = vadd.xlane.f32.xlu0 %v1089
    %v1091 = vpop.xlane.xlu0 %1090
    %v1092 = vmul.f32 %v1091, %v1083
    %v1093 = vadd.f32 %v1092, 1e-05
    %v1094 = vrsqrt.pop %v1093
    %v1095 = vmul.f32 %v1085, %v1094
    %v1096 = vmul.f32 %v1086, %v1094
    %v1097 = vld [vmem:[%s3] sm:$0x3]
    %v1099 = vlaneseq
    %v1100 = vshrl.u32 %v1099, 7
    %v1101 = vsub.s32 0, %v1100
    %v1102 = vrot.slane %v1097, %v1101
    %v1103 = vlaneseq
    %v1104 = vshrl.u32 %v1103, 7
    %v1105 = vsub.s32 1, %v1104
    %v1106 = vrot.slane %v1097, %v1105
    %v1109 = vmul.f32 %v1095, %v1102
    %v1110 = vmul.f32 %v1096, %v1106
    %v1111 = vld [vmem:[%s4] sm:$0x3]
    %v1113 = vlaneseq
    %v1114 = vshrl.u32 %v1113, 7
    %v1115 = vsub.s32 0, %v1114
    %v1116 = vrot.slane %v1111, %v1115
    %v1117 = vlaneseq
    %v1118 = vshrl.u32 %v1117, 7
    %v1119 = vsub.s32 1, %v1118
    %v1120 = vrot.slane %v1111, %v1119
    %v1123 = vadd.f32 %v1109, %v1116
    %v1124 = vadd.f32 %v1110, %v1120
    %v1125 = vmax.f32 %v1123, 0.0
    %v1126 = vmax.f32 %v1124, 0.0
    %v1127 = vpack.c.bf16 %v1125, %v1125
    %v1128 = vpack.c.bf16 %v1126, %v1126
    %v1129 = vld [vmem:[#allocation7] sm:$0xf]
    %v1130 = vld [vmem:[#allocation7 + $0x4] sm:$0xf]
    %v1131 = vld [vmem:[#allocation7 + $0x8] sm:$0xf]
    %v1132 = vld [vmem:[#allocation7 + $0xc] sm:$0xf]
    %v1133 = vld [vmem:[#allocation7 + $0x10] sm:$0xf]
    %v1134 = vld [vmem:[#allocation7 + $0x14] sm:$0xf]
    %v1135 = vld [vmem:[#allocation7 + $0x18] sm:$0xf]
    %v1136 = vld [vmem:[#allocation7 + $0x1c] sm:$0xf]
    %v1137 = vld [vmem:[#allocation7 + $0x20] sm:$0xf]
    %v1138 = vld [vmem:[#allocation7 + $0x24] sm:$0xf]
    %v1139 = vld [vmem:[#allocation7 + $0x28] sm:$0xf]
    %v1140 = vld [vmem:[#allocation7 + $0x2c] sm:$0xf]
    %v1141 = vld [vmem:[#allocation7 + $0x30] sm:$0xf]
    %v1142 = vld [vmem:[#allocation7 + $0x34] sm:$0xf]
    %v1143 = vld [vmem:[#allocation7 + $0x38] sm:$0xf]
    %v1144 = vld [vmem:[#allocation7 + $0x3c] sm:$0xf]
    %v1145 = vld [vmem:[#allocation7 + $0x40] sm:$0xf]
    %v1146 = vld [vmem:[#allocation7 + $0x44] sm:$0xf]
    %v1147 = vld [vmem:[#allocation7 + $0x48] sm:$0xf]
    %v1148 = vld [vmem:[#allocation7 + $0x4c] sm:$0xf]
    %v1149 = vld [vmem:[#allocation7 + $0x50] sm:$0xf]
    %v1150 = vld [vmem:[#allocation7 + $0x54] sm:$0xf]
    %v1151 = vld [vmem:[#allocation7 + $0x58] sm:$0xf]
    %v1152 = vld [vmem:[#allocation7 + $0x5c] sm:$0xf]
    %v1153 = vld [vmem:[#allocation7 + $0x60] sm:$0xf]
    %v1154 = vld [vmem:[#allocation7 + $0x64] sm:$0xf]
    %v1155 = vld [vmem:[#allocation7 + $0x68] sm:$0xf]
    %v1156 = vld [vmem:[#allocation7 + $0x6c] sm:$0xf]
    %v1157 = vld [vmem:[#allocation7 + $0x70] sm:$0xf]
    %v1158 = vld [vmem:[#allocation7 + $0x74] sm:$0xf]
    %v1159 = vld [vmem:[#allocation7 + $0x78] sm:$0xf]
    %v1160 = vld [vmem:[#allocation7 + $0x7c] sm:$0xf]
    %v1161 = vld [vmem:[%s6] sm:$0x1]
    %v1163 = vlaneseq
    %v1164 = vshrl.u32 %v1163, 7
    %v1165 = vsub.s32 0, %v1164
    %v1166 = vrot.slane %v1161, %v1165
    %v1200 = vunpack.c.l.b16 %v1129
    %v1201 = vunpack.c.l.b16 %v1130
    %v1202 = vunpack.c.l.b16 %v1131
    %v1203 = vunpack.c.l.b16 %v1132
    %v1204 = vunpack.c.l.b16 %v1133
    %v1205 = vunpack.c.l.b16 %v1134
    %v1206 = vunpack.c.l.b16 %v1135
    %v1207 = vunpack.c.l.b16 %v1136
    %v1208 = vunpack.c.l.b16 %v1137
    %v1209 = vunpack.c.l.b16 %v1138
    %v1210 = vunpack.c.l.b16 %v1139
    %v1211 = vunpack.c.l.b16 %v1140
    %v1212 = vunpack.c.l.b16 %v1141
    %v1213 = vunpack.c.l.b16 %v1142
    %v1214 = vunpack.c.l.b16 %v1143
    %v1215 = vunpack.c.l.b16 %v1144
    %v1216 = vunpack.c.l.b16 %v1145
    %v1217 = vunpack.c.l.b16 %v1146
    %v1218 = vunpack.c.l.b16 %v1147
    %v1219 = vunpack.c.l.b16 %v1148
    %v1220 = vunpack.c.l.b16 %v1149
    %v1221 = vunpack.c.l.b16 %v1150
    %v1222 = vunpack.c.l.b16 %v1151
    %v1223 = vunpack.c.l.b16 %v1152
    %v1224 = vunpack.c.l.b16 %v1153
    %v1225 = vunpack.c.l.b16 %v1154
    %v1226 = vunpack.c.l.b16 %v1155
    %v1227 = vunpack.c.l.b16 %v1156
    %v1228 = vunpack.c.l.b16 %v1157
    %v1229 = vunpack.c.l.b16 %v1158
    %v1230 = vunpack.c.l.b16 %v1159
    %v1231 = vunpack.c.l.b16 %v1160
    %v1232 = vpack.c.b16 %v1201, %v1200
    %v1233 = vpack.c.b16 %v1203, %v1202
    %v1234 = vpack.c.b16 %v1205, %v1204
    %v1235 = vpack.c.b16 %v1207, %v1206
    %v1236 = vpack.c.b16 %v1209, %v1208
    %v1237 = vpack.c.b16 %v1211, %v1210
    %v1238 = vpack.c.b16 %v1213, %v1212
    %v1239 = vpack.c.b16 %v1215, %v1214
    %v1240 = vpack.c.b16 %v1217, %v1216
    %v1241 = vpack.c.b16 %v1219, %v1218
    %v1242 = vpack.c.b16 %v1221, %v1220
    %v1243 = vpack.c.b16 %v1223, %v1222
    %v1244 = vpack.c.b16 %v1225, %v1224
    %v1245 = vpack.c.b16 %v1227, %v1226
    %v1246 = vpack.c.b16 %v1229, %v1228
    %v1247 = vpack.c.b16 %v1231, %v1230
    %1264 = vmatprep.subr.bf16.mxu0 0
    %1265 = vmatpush1.bf16.msra.mxu0 %v1232
    %1266 = vmatprep.subr.bf16.mxu0 0
    %1267 = vmatpush1.bf16.msra.mxu0 %v1233
    %1268 = vmatprep.subr.bf16.mxu0 0
    %1269 = vmatpush1.bf16.msra.mxu0 %v1234
    %1270 = vmatprep.subr.bf16.mxu0 0
    %1271 = vmatpush1.bf16.msra.mxu0 %v1235
    %1272 = vmatprep.subr.bf16.mxu0 0
    %1273 = vmatpush1.bf16.msra.mxu0 %v1236
    %1274 = vmatprep.subr.bf16.mxu0 0
    %1275 = vmatpush1.bf16.msra.mxu0 %v1237
    %1276 = vmatprep.subr.bf16.mxu0 0
    %1277 = vmatpush1.bf16.msra.mxu0 %v1238
    %1278 = vmatprep.subr.bf16.mxu0 0
    %1279 = vmatpush1.bf16.msra.mxu0 %v1239
    %1280 = vmatprep.subr.bf16.mxu0 0
    %1281 = vmatpush1.bf16.msra.mxu0 %v1240
    %1282 = vmatprep.subr.bf16.mxu0 0
    %1283 = vmatpush1.bf16.msra.mxu0 %v1241
    %1284 = vmatprep.subr.bf16.mxu0 0
    %1285 = vmatpush1.bf16.msra.mxu0 %v1242
    %1286 = vmatprep.subr.bf16.mxu0 0
    %1287 = vmatpush1.bf16.msra.mxu0 %v1243
    %1288 = vmatprep.subr.bf16.mxu0 0
    %1289 = vmatpush1.bf16.msra.mxu0 %v1244
    %1290 = vmatprep.subr.bf16.mxu0 0
    %1291 = vmatpush1.bf16.msra.mxu0 %v1245
    %1292 = vmatprep.subr.bf16.mxu0 0
    %1293 = vmatpush1.bf16.msra.mxu0 %v1246
    %1294 = vmatprep.subr.bf16.mxu0 0
    %1295 = vmatpush1.bf16.msra.mxu0 %v1247
    %1296 = vmatprep.mubr.bf16.mxu0 %v1128
    %1297 = vmatmul.mubr.bf16.gmra.mrb[0].mxu0 %v1127
    %v1298 = vpop.f32.mrb[0].mxu0
    %v1299 = vadd.f32 %v1166, %v1298
    %v1300 = vpop.f32.mrb[0].mxu0
    %v1301 = vpop.f32.mrb[0].mxu0
    %v1302 = vpop.f32.mrb[0].mxu0
    %1303 = vdwg.mxu0
    %1304 = vadd.xlane.f32.xlu0 %v1299
    %v1305 = vpop.xlane.xlu0 %1304
    %v1306 = vrcp.pop 128.0
    %v1307 = vmul.f32 %v1305, %v1306
    %v1308 = vsub.f32 %v1299, %v1307
    %v1309 = vmul.f32 %v1308, %v1308
    %1310 = vadd.xlane.f32.xlu0 %v1309
    %v1311 = vpop.xlane.xlu0 %1310
    %v1312 = vmul.f32 %v1311, %v1306
    %v1313 = vadd.f32 %v1312, 1e-05
    %v1314 = vrsqrt.pop %v1313
    %v1315 = vmul.f32 %v1308, %v1314
    %v1316 = vld [vmem:[%s7] sm:$0x1]
    %v1318 = vlaneseq
    %v1319 = vshrl.u32 %v1318, 7
    %v1320 = vsub.s32 0, %v1319
    %v1321 = vrot.slane %v1316, %v1320
    %v1323 = vmul.f32 %v1315, %v1321
    %v1324 = vld [vmem:[%s8] sm:$0x1]
    %v1326 = vlaneseq
    %v1327 = vshrl.u32 %v1326, 7
    %v1328 = vsub.s32 0, %v1327
    %v1329 = vrot.slane %v1324, %v1328
    %v1331 = vadd.f32 %v1323, %v1329
    %v1332 = vmax.f32 %v1331, 0.0
    %v1333 = vpack.c.bf16 %v1332, %v1332
    %v1334 = vld [vmem:[#allocation8] sm:$0xf]
    %v1335 = vld [vmem:[#allocation8 + $0x4] sm:$0xf]
    %v1336 = vld [vmem:[#allocation8 + $0x8] sm:$0xf]
    %v1337 = vld [vmem:[#allocation8 + $0xc] sm:$0xf]
    %v1338 = vld [vmem:[#allocation8 + $0x10] sm:$0xf]
    %v1339 = vld [vmem:[#allocation8 + $0x14] sm:$0xf]
    %v1340 = vld [vmem:[#allocation8 + $0x18] sm:$0xf]
    %v1341 = vld [vmem:[#allocation8 + $0x1c] sm:$0xf]
    %v1342 = vld [vmem:[#allocation8 + $0x20] sm:$0xf]
    %v1343 = vld [vmem:[#allocation8 + $0x24] sm:$0xf]
    %v1344 = vld [vmem:[#allocation8 + $0x28] sm:$0xf]
    %v1345 = vld [vmem:[#allocation8 + $0x2c] sm:$0xf]
    %v1346 = vld [vmem:[#allocation8 + $0x30] sm:$0xf]
    %v1347 = vld [vmem:[#allocation8 + $0x34] sm:$0xf]
    %v1348 = vld [vmem:[#allocation8 + $0x38] sm:$0xf]
    %v1349 = vld [vmem:[#allocation8 + $0x3c] sm:$0xf]
    %v1350 = vld [vmem:[%s10] sm:$0x1]
    %v1352 = vlaneseq
    %v1353 = vshrl.u32 %v1352, 7
    %v1354 = vsub.s32 0, %v1353
    %v1355 = vrot.slane %v1350, %v1354
    %v1373 = vunpack.c.l.b16 %v1334
    %v1374 = vunpack.c.l.b16 %v1335
    %v1375 = vunpack.c.l.b16 %v1336
    %v1376 = vunpack.c.l.b16 %v1337
    %v1377 = vunpack.c.l.b16 %v1338
    %v1378 = vunpack.c.l.b16 %v1339
    %v1379 = vunpack.c.l.b16 %v1340
    %v1380 = vunpack.c.l.b16 %v1341
    %v1381 = vunpack.c.l.b16 %v1342
    %v1382 = vunpack.c.l.b16 %v1343
    %v1383 = vunpack.c.l.b16 %v1344
    %v1384 = vunpack.c.l.b16 %v1345
    %v1385 = vunpack.c.l.b16 %v1346
    %v1386 = vunpack.c.l.b16 %v1347
    %v1387 = vunpack.c.l.b16 %v1348
    %v1388 = vunpack.c.l.b16 %v1349
    %v1389 = vpack.c.b16 %v1374, %v1373
    %v1390 = vpack.c.b16 %v1376, %v1375
    %v1391 = vpack.c.b16 %v1378, %v1377
    %v1392 = vpack.c.b16 %v1380, %v1379
    %v1393 = vpack.c.b16 %v1382, %v1381
    %v1394 = vpack.c.b16 %v1384, %v1383
    %v1395 = vpack.c.b16 %v1386, %v1385
    %v1396 = vpack.c.b16 %v1388, %v1387
    %1405 = vmatprep.subr.bf16.mxu0 0
    %1406 = vmatpush1.bf16.msra.mxu0 %v1389
    %1407 = vmatprep.subr.bf16.mxu0 0
    %1408 = vmatpush1.bf16.msra.mxu0 %v1390
    %1409 = vmatprep.subr.bf16.mxu0 0
    %1410 = vmatpush1.bf16.msra.mxu0 %v1391
    %1411 = vmatprep.subr.bf16.mxu0 0
    %1412 = vmatpush1.bf16.msra.mxu0 %v1392
    %1413 = vmatprep.subr.bf16.mxu0 0
    %1414 = vmatpush1.bf16.msra.mxu0 %v1393
    %1415 = vmatprep.subr.bf16.mxu0 0
    %1416 = vmatpush1.bf16.msra.mxu0 %v1394
    %1417 = vmatprep.subr.bf16.mxu0 0
    %1418 = vmatpush1.bf16.msra.mxu0 %v1395
    %1419 = vmatprep.subr.bf16.mxu0 0
    %1420 = vmatpush1.bf16.msra.mxu0 %v1396
    %1421 = vmatprep.subr.bf16.mxu0 0
    %1422 = vmatpush1.bf16.msra.mxu0 0
    %1423 = vmatprep.subr.bf16.mxu0 0
    %1424 = vmatpush1.bf16.msra.mxu0 0
    %1425 = vmatprep.subr.bf16.mxu0 0
    %1426 = vmatpush1.bf16.msra.mxu0 0
    %1427 = vmatprep.subr.bf16.mxu0 0
    %1428 = vmatpush1.bf16.msra.mxu0 0
    %1429 = vmatprep.subr.bf16.mxu0 0
    %1430 = vmatpush1.bf16.msra.mxu0 0
    %1431 = vmatprep.subr.bf16.mxu0 0
    %1432 = vmatpush1.bf16.msra.mxu0 0
    %1433 = vmatprep.subr.bf16.mxu0 0
    %1434 = vmatpush1.bf16.msra.mxu0 0
    %1435 = vmatprep.subr.bf16.mxu0 0
    %1436 = vmatpush1.bf16.msra.mxu0 0
    %1437 = vmatprep.mubr.bf16.mxu0 0
    %1438 = vmatmul.mubr.bf16.gmra.mrb[0].mxu0 %v1333
    %v1439 = vpop.f32.mrb[0].mxu0
    %v1440 = vadd.f32 %v1355, %v1439
    %v1441 = vpop.f32.mrb[0].mxu0
    %v1442 = vpop.f32.mrb[0].mxu0
    %v1443 = vpop.f32.mrb[0].mxu0
    %1444 = vdwg.mxu0
    %v1445 = vmax.f32 %v1440, 0.0
    %v1446 = vpack.c.bf16 %v1445, %v1445
    %v1447 = vld [vmem:[#allocation10] sm:$0xf]
    %v1448 = vld [vmem:[#allocation10 + $0x4] sm:$0xf]
    %v1449 = vld [vmem:[#allocation10 + $0x8] sm:$0xf]
    %v1450 = vld [vmem:[#allocation10 + $0xc] sm:$0xf]
    %v1451 = vld [vmem:[#allocation10 + $0x10] sm:$0xf]
    %v1452 = vld [vmem:[#allocation10 + $0x14] sm:$0xf]
    %v1453 = vld [vmem:[#allocation10 + $0x18] sm:$0xf]
    %v1454 = vld [vmem:[#allocation10 + $0x1c] sm:$0xf]
    %v1455 = vld [vmem:[#allocation10 + $0x20] sm:$0xf]
    %v1456 = vld [vmem:[#allocation10 + $0x24] sm:$0xf]
    %v1457 = vld [vmem:[#allocation10 + $0x28] sm:$0xf]
    %v1458 = vld [vmem:[#allocation10 + $0x2c] sm:$0xf]
    %v1459 = vld [vmem:[#allocation10 + $0x30] sm:$0xf]
    %v1460 = vld [vmem:[#allocation10 + $0x34] sm:$0xf]
    %v1461 = vld [vmem:[#allocation10 + $0x38] sm:$0xf]
    %v1462 = vld [vmem:[#allocation10 + $0x3c] sm:$0xf]
    %v1463 = vld [vmem:[%s12] sm:$0x1]
    %v1465 = vlaneseq
    %v1466 = vshrl.u32 %v1465, 7
    %v1467 = vsub.s32 0, %v1466
    %v1468 = vrot.slane %v1463, %v1467
    %v1486 = vunpack.c.l.b16 %v1447
    %v1487 = vunpack.c.l.b16 %v1448
    %v1488 = vunpack.c.l.b16 %v1449
    %v1489 = vunpack.c.l.b16 %v1450
    %v1490 = vunpack.c.l.b16 %v1451
    %v1491 = vunpack.c.l.b16 %v1452
    %v1492 = vunpack.c.l.b16 %v1453
    %v1493 = vunpack.c.l.b16 %v1454
    %v1494 = vunpack.c.l.b16 %v1455
    %v1495 = vunpack.c.l.b16 %v1456
    %v1496 = vunpack.c.l.b16 %v1457
    %v1497 = vunpack.c.l.b16 %v1458
    %v1498 = vunpack.c.l.b16 %v1459
    %v1499 = vunpack.c.l.b16 %v1460
    %v1500 = vunpack.c.l.b16 %v1461
    %v1501 = vunpack.c.l.b16 %v1462
    %v1502 = vpack.c.b16 %v1487, %v1486
    %v1503 = vpack.c.b16 %v1489, %v1488
    %v1504 = vpack.c.b16 %v1491, %v1490
    %v1505 = vpack.c.b16 %v1493, %v1492
    %v1506 = vpack.c.b16 %v1495, %v1494
    %v1507 = vpack.c.b16 %v1497, %v1496
    %v1508 = vpack.c.b16 %v1499, %v1498
    %v1509 = vpack.c.b16 %v1501, %v1500
    %1518 = vmatprep.subr.bf16.mxu0 0
    %1519 = vmatpush1.bf16.msra.mxu0 %v1502
    %1520 = vmatprep.subr.bf16.mxu0 0
    %1521 = vmatpush1.bf16.msra.mxu0 %v1503
    %1522 = vmatprep.subr.bf16.mxu0 0
    %1523 = vmatpush1.bf16.msra.mxu0 %v1504
    %1524 = vmatprep.subr.bf16.mxu0 0
    %1525 = vmatpush1.bf16.msra.mxu0 %v1505
    %1526 = vmatprep.subr.bf16.mxu0 0
    %1527 = vmatpush1.bf16.msra.mxu0 %v1506
    %1528 = vmatprep.subr.bf16.mxu0 0
    %1529 = vmatpush1.bf16.msra.mxu0 %v1507
    %1530 = vmatprep.subr.bf16.mxu0 0
    %1531 = vmatpush1.bf16.msra.mxu0 %v1508
    %1532 = vmatprep.subr.bf16.mxu0 0
    %1533 = vmatpush1.bf16.msra.mxu0 %v1509
    %1534 = vmatprep.subr.bf16.mxu0 0
    %1535 = vmatpush1.bf16.msra.mxu0 0
    %1536 = vmatprep.subr.bf16.mxu0 0
    %1537 = vmatpush1.bf16.msra.mxu0 0
    %1538 = vmatprep.subr.bf16.mxu0 0
    %1539 = vmatpush1.bf16.msra.mxu0 0
    %1540 = vmatprep.subr.bf16.mxu0 0
    %1541 = vmatpush1.bf16.msra.mxu0 0
    %1542 = vmatprep.subr.bf16.mxu0 0
    %1543 = vmatpush1.bf16.msra.mxu0 0
    %1544 = vmatprep.subr.bf16.mxu0 0
    %1545 = vmatpush1.bf16.msra.mxu0 0
    %1546 = vmatprep.subr.bf16.mxu0 0
    %1547 = vmatpush1.bf16.msra.mxu0 0
    %1548 = vmatprep.subr.bf16.mxu0 0
    %1549 = vmatpush1.bf16.msra.mxu0 0
    %1550 = vmatprep.mubr.bf16.mxu0 0
    %1551 = vmatmul.mubr.bf16.gmra.mrb[0].mxu0 %v1446
    %v1552 = vpop.f32.mrb[0].mxu0
    %v1553 = vadd.f32 %v1468, %v1552
    %v1554 = vpop.f32.mrb[0].mxu0
    %v1555 = vpop.f32.mrb[0].mxu0
    %v1556 = vpop.f32.mrb[0].mxu0
    %1557 = vdwg.mxu0
    %1558 = vst [vmem:[#allocation11] sm:$0xff] %v1553
    // Predicated region
    $region74: #{tpu_custom_call.1} parent=1 // pred_check
      _
    $region75: #{tpu_custom_call.1} parent=1 // pred_check_branch
      %1560 = sbr.rel (0) target = $region77
    $region76: #{tpu_custom_call.1} parent=1 // pred_region
      %s1562 = ssub.s32 128, 128
      %1563 = vsyncadd [#allocation4], %s1562
      %s1565 = sshll.u32 [#allocation11], 4
      %s1566 = int_to_ptr.vmem [resolvable:$true] %s1565
      %1568 = dma.vmem_to_hbm [thread:$0]  %s1566, 128, %s13, [#allocation4]
    $region77: #{tpu_custom_call.1} parent=1 // pred_fallthru
      _
    // Predicated region
    $region78: #{tpu_custom_call.1} parent=1 // pred_check
      _
    $region79: #{tpu_custom_call.1} parent=1 // pred_check_branch
      %1570 = sbr.rel (0) target = $region81
    $region80: #{tpu_custom_call.1} parent=1 // pred_region
      %1571 = dma.done [#allocation4], 128
    $region81: #{tpu_custom_call.1} parent=1 // pred_fallthru
      _
    %1572 = vsyncpa [#allocation3], 1
    %1573 = vsyncpa [#allocation6], 1
    %1574 = vsyncpa [#allocation9], 1
    %1575 = vsyncpa [#allocation4], 1

</llo_original>
